<compile_context>
chip_gen: v6e
topology: v6e:2x2x1
jax: 0.10.0
libtpu: 0.0.40
codegen_flags: <defaults>
</compile_context>

<pallas_src>
import jax
import jax.numpy as jnp
from jax.experimental import pallas as pl
from jax.experimental.pallas import tpu as pltpu

NOISE_DIM = 512
HIDDEN = 1024
CLASS_SIZE = 64
CLASS_PAD = 128          # lane-dense padded width for the 64-wide output stage
BN_EPS = 1e-5
LEAKY_SLOPE = 0.2
TN = 512                 # HIDDEN column-block width; grid = HIDDEN // TN = 2 steps


def classifier_kernel(x_ref, w1_ref, b1_ref, g1_ref, be1_ref,
                      w2_ref, b2_ref, g2_ref, be2_ref, o_ref):
    j = pl.program_id(0)

    # Output block has a constant index_map across the grid -> VMEM-resident accumulator.
    @pl.when(j == 0)
    def _():
        o_ref[...] = jnp.zeros_like(o_ref)

    # ---- Linear(512 -> 1024), column block j: bf16 operands, f32 accumulation on the MXU ----
    h = jnp.dot(x_ref[...], w1_ref[...], preferred_element_type=jnp.float32)
    h = h + b1_ref[...]

    # ---- BatchNorm1d(1024), training mode (batch stats, biased variance) on this block.
    #      Stats reduce over the batch axis only, so per-column-block stats are exact.
    mu1 = jnp.mean(h, axis=0, keepdims=True)
    var1 = jnp.maximum(jnp.mean(h * h, axis=0, keepdims=True) - mu1 * mu1, 0.0)
    h = (h - mu1) * jax.lax.rsqrt(var1 + BN_EPS) * g1_ref[...] + be1_ref[...]

    # ---- LeakyReLU(0.2): single vmax instead of compare+select ----
    h = jnp.maximum(h, LEAKY_SLOPE * h)

    # ---- Linear(1024 -> 128pad): accumulate this K block's partial product into o_ref ----
    o_ref[...] += jnp.dot(h.astype(jnp.bfloat16), w2_ref[...],
                          preferred_element_type=jnp.float32)

    # ---- Epilogue on the last K block: bias, BatchNorm1d, Sigmoid, overwrite output in place ----
    @pl.when(j == pl.num_programs(0) - 1)
    def _():
        z = o_ref[...] + b2_ref[...]
        mu2 = jnp.mean(z, axis=0, keepdims=True)
        var2 = jnp.maximum(jnp.mean(z * z, axis=0, keepdims=True) - mu2 * mu2, 0.0)
        z = (z - mu2) * jax.lax.rsqrt(var2 + BN_EPS) * g2_ref[...] + be2_ref[...]
        # Numerically stable sigmoid on the EUP: sigmoid(z) = 0.5 * (tanh(z/2) + 1)
        o_ref[...] = 0.5 * (jnp.tanh(0.5 * z) + 1.0)


def classifier_forward(x, params):
    """x: [B, NOISE_DIM] float32.  Returns [B, CLASS_SIZE] float32 (training-mode BatchNorm)."""
    B = x.shape[0]
    w1, b1, g1, be1, w2, b2, g2, be2 = params

    # bf16 on the DMA-bound matmul operand path; f32 everywhere else.
    x_bf = x.astype(jnp.bfloat16)
    w1_bf = w1.astype(jnp.bfloat16)

    # Pad the 64-wide second stage to 128 lanes (unmasked, lane-dense stores); sliced off below.
    pad = CLASS_PAD - CLASS_SIZE
    w2_p = jnp.pad(w2.astype(jnp.bfloat16), ((0, 0), (0, pad)))
    b2_p = jnp.pad(b2, ((0, 0), (0, pad)))
    g2_p = jnp.pad(g2, ((0, 0), (0, pad)))
    be2_p = jnp.pad(be2, ((0, 0), (0, pad)))

    n_blocks = HIDDEN // TN

    out = pl.pallas_call(
        classifier_kernel,
        out_shape=jax.ShapeDtypeStruct((B, CLASS_PAD), jnp.float32),
        grid=(n_blocks,),
        in_specs=[
            pl.BlockSpec((B, NOISE_DIM), lambda j: (0, 0)),      # x (VMEM-resident across steps)
            pl.BlockSpec((NOISE_DIM, TN), lambda j: (0, j)),     # w1 column block (bf16)
            pl.BlockSpec((1, TN), lambda j: (0, j)),             # b1 block
            pl.BlockSpec((1, TN), lambda j: (0, j)),             # gamma1 block
            pl.BlockSpec((1, TN), lambda j: (0, j)),             # beta1 block
            pl.BlockSpec((TN, CLASS_PAD), lambda j: (j, 0)),     # w2 K block (bf16, padded N)
            pl.BlockSpec((1, CLASS_PAD), lambda j: (0, 0)),      # b2 (resident)
            pl.BlockSpec((1, CLASS_PAD), lambda j: (0, 0)),      # gamma2 (resident)
            pl.BlockSpec((1, CLASS_PAD), lambda j: (0, 0)),      # beta2 (resident)
        ],
        # Constant block index across the (single) grid axis -> output stays resident in VMEM
        # and doubles as the Linear2 accumulator; written back to HBM once at the end.
        out_specs=pl.BlockSpec((B, CLASS_PAD), lambda j: (0, 0)),
        compiler_params=pltpu.CompilerParams(
            # The grid axis carries the output accumulator (K reduction) -> "arbitrary".
            # BN couples all rows via batch statistics, so the batch axis cannot be tiled;
            # at large B one would switch to a two-pass BN to expose a "parallel" batch axis.
            dimension_semantics=("arbitrary",),
            vmem_limit_bytes=8 << 20,   # actual footprint ~1.5 MiB; generous headroom, far below
                                        # physical VMEM on v5e/v6e (128 MiB) and v7x (64 MiB)
        ),
    )(x_bf, w1_bf, b1, g1, be1, w2_p, b2_p, g2_p, be2_p)

    return out[:, :CLASS_SIZE]


def classifier_reference(x, params):
    """Pure-JAX f32 reference of the same training-mode forward pass (for validation)."""
    w1, b1, g1, be1, w2, b2, g2, be2 = params
    h = x @ w1.astype(jnp.float32) + b1
    mu1 = jnp.mean(h, axis=0, keepdims=True)
    var1 = jnp.mean((h - mu1) ** 2, axis=0, keepdims=True)
    h = (h - mu1) * jax.lax.rsqrt(var1 + BN_EPS) * g1 + be1
    h = jnp.where(h >= 0, h, LEAKY_SLOPE * h)
    z = h @ w2.astype(jnp.float32) + b2
    mu2 = jnp.mean(z, axis=0, keepdims=True)
    var2 = jnp.mean((z - mu2) ** 2, axis=0, keepdims=True)
    z = (z - mu2) * jax.lax.rsqrt(var2 + BN_EPS) * g2 + be2
    return jax.nn.sigmoid(z)


def init_params(key):
    """Deterministic init mirroring nn.Linear / nn.BatchNorm1d shapes.
    Linear weights stored transposed ([in, out]) in bf16; biases / BN params in f32 as [1, out]."""
    k1, k2, k3, k4 = jax.random.split(key, 4)
    lim1 = 1.0 / jnp.sqrt(NOISE_DIM)
    w1 = jax.random.uniform(k1, (NOISE_DIM, HIDDEN), jnp.float32, -lim1, lim1).astype(jnp.bfloat16)
    b1 = jax.random.uniform(k2, (1, HIDDEN), jnp.float32, -lim1, lim1)
    lim2 = 1.0 / jnp.sqrt(HIDDEN)
    w2 = jax.random.uniform(k3, (HIDDEN, CLASS_SIZE), jnp.float32, -lim2, lim2).astype(jnp.bfloat16)
    b2 = jax.random.uniform(k4, (1, CLASS_SIZE), jnp.float32, -lim2, lim2)
    # BatchNorm1d default init: weight = 1, bias = 0
    g1 = jnp.ones((1, HIDDEN), jnp.float32)
    be1 = jnp.zeros((1, HIDDEN), jnp.float32)
    g2 = jnp.ones((1, CLASS_SIZE), jnp.float32)
    be2 = jnp.zeros((1, CLASS_SIZE), jnp.float32)
    # TODO(synk): BatchNorm running_mean/running_var tracking is not implemented; the kernel
    # reproduces PyTorch train()-mode normalization (batch statistics) only.
    return (w1, b1, g1, be1, w2, b2, g2, be2)


if __name__ == "__main__":
    key = jax.random.PRNGKey(0)
    kx, kp = jax.random.split(key)
    B = 8  # small batch; BatchNorm1d needs B > 1 for batch statistics
    x = jax.random.normal(kx, (B, NOISE_DIM), jnp.float32)
    params = init_params(kp)

    out = classifier_forward(x, params)
    out = jax.block_until_ready(out)

    assert out.shape == (B, CLASS_SIZE)
    assert bool(jnp.all(jnp.isfinite(out)))
    assert bool(jnp.all((out >= 0.0) & (out <= 1.0)))

    ref = classifier_reference(x, params)
    max_err = float(jnp.max(jnp.abs(out - ref)))
    assert max_err < 3e-2, f"kernel vs reference mismatch: max |err| = {max_err}"

    print("KERNEL_OK")
</pallas_src>

<mosaic_0001>
module attributes {stable_mosaic.version = 11 : i64} {
  func.func @classifier_kernel(%arg0: i32, %arg1: memref<8x512xbf16, #tpu.memory_space<vmem>>, %arg2: memref<512x512xbf16, #tpu.memory_space<vmem>>, %arg3: memref<1x512xf32, #tpu.memory_space<vmem>>, %arg4: memref<1x512xf32, #tpu.memory_space<vmem>>, %arg5: memref<1x512xf32, #tpu.memory_space<vmem>>, %arg6: memref<512x128xbf16, #tpu.memory_space<vmem>>, %arg7: memref<1x128xf32, #tpu.memory_space<vmem>>, %arg8: memref<1x128xf32, #tpu.memory_space<vmem>>, %arg9: memref<1x128xf32, #tpu.memory_space<vmem>>, %arg10: memref<8x128xf32, #tpu.memory_space<vmem>>) attributes {dimension_semantics = [#tpu.dimension_semantics<arbitrary>], iteration_bounds = array<i64: 2>, scalar_prefetch = 0 : i64, scratch_operands = 0 : i64, tpu.core_type = #tpu.core_type<tc>, window_params = [{pipeline_mode = #tpu.pipeline_mode<synchronous>, transform_indices = @transform_0, window_bounds = array<i64: 8, 512>}, {transform_indices = @transform_1, window_bounds = array<i64: 512, 512>}, {transform_indices = @transform_2, window_bounds = array<i64: 1, 512>}, {transform_indices = @transform_3, window_bounds = array<i64: 1, 512>}, {transform_indices = @transform_4, window_bounds = array<i64: 1, 512>}, {transform_indices = @transform_5, window_bounds = array<i64: 512, 128>}, {pipeline_mode = #tpu.pipeline_mode<synchronous>, transform_indices = @transform_6, window_bounds = array<i64: 1, 128>}, {pipeline_mode = #tpu.pipeline_mode<synchronous>, transform_indices = @transform_7, window_bounds = array<i64: 1, 128>}, {pipeline_mode = #tpu.pipeline_mode<synchronous>, transform_indices = @transform_8, window_bounds = array<i64: 1, 128>}, {pipeline_mode = #tpu.pipeline_mode<synchronous>, transform_indices = @transform_9, window_bounds = array<i64: 8, 128>}]} {
    %c0_i32 = arith.constant 0 : i32
    %0 = arith.cmpi eq, %arg0, %c0_i32 : i32
    %1 = arith.extui %0 : i1 to i32
    %c0_i32_0 = arith.constant 0 : i32
    %2 = arith.cmpi ne, %1, %c0_i32_0 : i32
    scf.if %2 {
      %cst_25 = arith.constant 0.000000e+00 : f32
      %47 = vector.broadcast %cst_25 : f32 to vector<8x128xf32>
      %c0_26 = arith.constant 0 : index
      %c0_27 = arith.constant 0 : index
      %48 = vector.load %arg10[%c0_26, %c0_27] : memref<8x128xf32, #tpu.memory_space<vmem>>, vector<8x128xf32>
      tpu.vector_store %arg10[%c0_26, %c0_27], %47 {strides = array<i32>} : memref<8x128xf32, #tpu.memory_space<vmem>>, vector<8x128xf32>,
    } else {
    }
    %c0 = arith.constant 0 : index
    %c0_1 = arith.constant 0 : index
    %3 = vector.load %arg1[%c0, %c0_1] : memref<8x512xbf16, #tpu.memory_space<vmem>>, vector<8x512xbf16>
    %c0_2 = arith.constant 0 : index
    %c0_3 = arith.constant 0 : index
    %4 = vector.load %arg2[%c0_2, %c0_3] : memref<512x512xbf16, #tpu.memory_space<vmem>>, vector<512x512xbf16>
    %cst = arith.constant dense<0.000000e+00> : vector<8x512xf32>
    %5 = tpu.matmul %3, %4, %cst {dimension_numbers = #tpu.dot_dimension_numbers<[1], [0], [0], [1], [0, 0, 1, 1], [], []>} : vector<8x512xbf16>, vector<512x512xbf16>, vector<8x512xf32> -> vector<8x512xf32>
    %c0_4 = arith.constant 0 : index
    %c0_5 = arith.constant 0 : index
    %6 = vector.load %arg3[%c0_4, %c0_5] : memref<1x512xf32, #tpu.memory_space<vmem>>, vector<1x512xf32>
    %7 = vector.broadcast %6 : vector<1x512xf32> to vector<8x512xf32>
    %8 = arith.addf %5, %7 : vector<8x512xf32>
    %cst_6 = arith.constant dense<0.000000e+00> : vector<512xf32>
    %9 = vector.multi_reduction <add>, %8, %cst_6 [0] : vector<8x512xf32> to vector<512xf32>
    %10 = vector.shape_cast %9 : vector<512xf32> to vector<1x512xf32>
    %cst_7 = arith.constant 8.000000e+00 : f32
    %11 = vector.broadcast %cst_7 : f32 to vector<1x512xf32>
    %12 = arith.divf %10, %11 : vector<1x512xf32>
    %13 = arith.mulf %8, %8 : vector<8x512xf32>
    %cst_8 = arith.constant dense<0.000000e+00> : vector<512xf32>
    %14 = vector.multi_reduction <add>, %13, %cst_8 [0] : vector<8x512xf32> to vector<512xf32>
    %15 = vector.shape_cast %14 : vector<512xf32> to vector<1x512xf32>
    %cst_9 = arith.constant 8.000000e+00 : f32
    %16 = vector.broadcast %cst_9 : f32 to vector<1x512xf32>
    %17 = arith.divf %15, %16 : vector<1x512xf32>
    %18 = arith.mulf %12, %12 : vector<1x512xf32>
    %19 = arith.subf %17, %18 : vector<1x512xf32>
    %cst_10 = arith.constant 0.000000e+00 : f32
    %20 = vector.broadcast %cst_10 : f32 to vector<1x512xf32>
    %21 = arith.maximumf %19, %20 : vector<1x512xf32>
    %22 = vector.broadcast %12 : vector<1x512xf32> to vector<8x512xf32>
    %23 = arith.subf %8, %22 : vector<8x512xf32>
    %cst_11 = arith.constant 9.99999974E-6 : f32
    %24 = vector.broadcast %cst_11 : f32 to vector<1x512xf32>
    %25 = arith.addf %21, %24 : vector<1x512xf32>
    %26 = math.rsqrt %25 : vector<1x512xf32>
    %27 = vector.broadcast %26 : vector<1x512xf32> to vector<8x512xf32>
    %28 = arith.mulf %23, %27 : vector<8x512xf32>
    %c0_12 = arith.constant 0 : index
    %c0_13 = arith.constant 0 : index
    %29 = vector.load %arg4[%c0_12, %c0_13] : memref<1x512xf32, #tpu.memory_space<vmem>>, vector<1x512xf32>
    %30 = vector.broadcast %29 : vector<1x512xf32> to vector<8x512xf32>
    %31 = arith.mulf %28, %30 : vector<8x512xf32>
    %c0_14 = arith.constant 0 : index
    %c0_15 = arith.constant 0 : index
    %32 = vector.load %arg5[%c0_14, %c0_15] : memref<1x512xf32, #tpu.memory_space<vmem>>, vector<1x512xf32>
    %33 = vector.broadcast %32 : vector<1x512xf32> to vector<8x512xf32>
    %34 = arith.addf %31, %33 : vector<8x512xf32>
    %cst_16 = arith.constant 2.000000e-01 : f32
    %35 = vector.broadcast %cst_16 : f32 to vector<8x512xf32>
    %36 = arith.mulf %35, %34 : vector<8x512xf32>
    %37 = arith.maximumf %34, %36 : vector<8x512xf32>
    %c0_17 = arith.constant 0 : index
    %c0_18 = arith.constant 0 : index
    %38 = vector.load %arg10[%c0_17, %c0_18] : memref<8x128xf32, #tpu.memory_space<vmem>>, vector<8x128xf32>
    %39 = arith.truncf %37 : vector<8x512xf32> to vector<8x512xbf16>
    %c0_19 = arith.constant 0 : index
    %c0_20 = arith.constant 0 : index
    %40 = vector.load %arg6[%c0_19, %c0_20] : memref<512x128xbf16, #tpu.memory_space<vmem>>, vector<512x128xbf16>
    %cst_21 = arith.constant dense<0.000000e+00> : vector<8x128xf32>
    %41 = tpu.matmul %39, %40, %cst_21 {dimension_numbers = #tpu.dot_dimension_numbers<[1], [0], [0], [1], [0, 0, 1, 1], [], []>} : vector<8x512xbf16>, vector<512x128xbf16>, vector<8x128xf32> -> vector<8x128xf32>
    %42 = arith.addf %38, %41 : vector<8x128xf32>
    %c0_22 = arith.constant 0 : index
    %c0_23 = arith.constant 0 : index
    %43 = vector.load %arg10[%c0_22, %c0_23] : memref<8x128xf32, #tpu.memory_space<vmem>>, vector<8x128xf32>
    tpu.vector_store %arg10[%c0_22, %c0_23], %42 {strides = array<i32>} : memref<8x128xf32, #tpu.memory_space<vmem>>, vector<8x128xf32>,
    %c1_i32 = arith.constant 1 : i32
    %44 = arith.cmpi eq, %arg0, %c1_i32 : i32
    %45 = arith.extui %44 : i1 to i32
    %c0_i32_24 = arith.constant 0 : i32
    %46 = arith.cmpi ne, %45, %c0_i32_24 : i32
    scf.if %46 {
      %c0_25 = arith.constant 0 : index
      %c0_26 = arith.constant 0 : index
      %47 = vector.load %arg10[%c0_25, %c0_26] : memref<8x128xf32, #tpu.memory_space<vmem>>, vector<8x128xf32>
      %c0_27 = arith.constant 0 : index
      %c0_28 = arith.constant 0 : index
      %48 = vector.load %arg7[%c0_27, %c0_28] : memref<1x128xf32, #tpu.memory_space<vmem>>, vector<1x128xf32>
      %49 = vector.broadcast %48 : vector<1x128xf32> to vector<8x128xf32>
      %50 = arith.addf %47, %49 : vector<8x128xf32>
      %cst_29 = arith.constant dense<0.000000e+00> : vector<128xf32>
      %51 = vector.multi_reduction <add>, %50, %cst_29 [0] : vector<8x128xf32> to vector<128xf32>
      %52 = vector.shape_cast %51 : vector<128xf32> to vector<1x128xf32>
      %cst_30 = arith.constant 8.000000e+00 : f32
      %53 = vector.broadcast %cst_30 : f32 to vector<1x128xf32>
      %54 = arith.divf %52, %53 : vector<1x128xf32>
      %55 = arith.mulf %50, %50 : vector<8x128xf32>
      %cst_31 = arith.constant dense<0.000000e+00> : vector<128xf32>
      %56 = vector.multi_reduction <add>, %55, %cst_31 [0] : vector<8x128xf32> to vector<128xf32>
      %57 = vector.shape_cast %56 : vector<128xf32> to vector<1x128xf32>
      %cst_32 = arith.constant 8.000000e+00 : f32
      %58 = vector.broadcast %cst_32 : f32 to vector<1x128xf32>
      %59 = arith.divf %57, %58 : vector<1x128xf32>
      %60 = arith.mulf %54, %54 : vector<1x128xf32>
      %61 = arith.subf %59, %60 : vector<1x128xf32>
      %cst_33 = arith.constant 0.000000e+00 : f32
      %62 = vector.broadcast %cst_33 : f32 to vector<1x128xf32>
      %63 = arith.maximumf %61, %62 : vector<1x128xf32>
      %64 = vector.broadcast %54 : vector<1x128xf32> to vector<8x128xf32>
      %65 = arith.subf %50, %64 : vector<8x128xf32>
      %cst_34 = arith.constant 9.99999974E-6 : f32
      %66 = vector.broadcast %cst_34 : f32 to vector<1x128xf32>
      %67 = arith.addf %63, %66 : vector<1x128xf32>
      %68 = math.rsqrt %67 : vector<1x128xf32>
      %69 = vector.broadcast %68 : vector<1x128xf32> to vector<8x128xf32>
      %70 = arith.mulf %65, %69 : vector<8x128xf32>
      %c0_35 = arith.constant 0 : index
      %c0_36 = arith.constant 0 : index
      %71 = vector.load %arg8[%c0_35, %c0_36] : memref<1x128xf32, #tpu.memory_space<vmem>>, vector<1x128xf32>
      %72 = vector.broadcast %71 : vector<1x128xf32> to vector<8x128xf32>
      %73 = arith.mulf %70, %72 : vector<8x128xf32>
      %c0_37 = arith.constant 0 : index
      %c0_38 = arith.constant 0 : index
      %74 = vector.load %arg9[%c0_37, %c0_38] : memref<1x128xf32, #tpu.memory_space<vmem>>, vector<1x128xf32>
      %75 = vector.broadcast %74 : vector<1x128xf32> to vector<8x128xf32>
      %76 = arith.addf %73, %75 : vector<8x128xf32>
      %cst_39 = arith.constant 5.000000e-01 : f32
      %77 = vector.broadcast %cst_39 : f32 to vector<8x128xf32>
      %78 = arith.mulf %77, %76 : vector<8x128xf32>
      %79 = math.tanh %78 : vector<8x128xf32>
      %cst_40 = arith.constant 1.000000e+00 : f32
      %80 = vector.broadcast %cst_40 : f32 to vector<8x128xf32>
      %81 = arith.addf %79, %80 : vector<8x128xf32>
      %cst_41 = arith.constant 5.000000e-01 : f32
      %82 = vector.broadcast %cst_41 : f32 to vector<8x128xf32>
      %83 = arith.mulf %82, %81 : vector<8x128xf32>
      %c0_42 = arith.constant 0 : index
      %c0_43 = arith.constant 0 : index
      %84 = vector.load %arg10[%c0_42, %c0_43] : memref<8x128xf32, #tpu.memory_space<vmem>>, vector<8x128xf32>
      tpu.vector_store %arg10[%c0_42, %c0_43], %83 {strides = array<i32>} : memref<8x128xf32, #tpu.memory_space<vmem>>, vector<8x128xf32>,
    } else {
    }
    return
  }
  func.func @transform_0(%arg0: i32) -> (i32, i32) {
    %c0_i32 = arith.constant 0 : i32
    %c0_i32_0 = arith.constant 0 : i32
    %c0_i32_1 = arith.constant 0 : i32
    return %c0_i32, %c0_i32_0 : i32, i32
  }
  func.func @transform_1(%arg0: i32) -> (i32, i32) {
    %c0_i32 = arith.constant 0 : i32
    %c0_i32_0 = arith.constant 0 : i32
    return %c0_i32, %arg0 : i32, i32
  }
  func.func @transform_2(%arg0: i32) -> (i32, i32) {
    %c0_i32 = arith.constant 0 : i32
    %c0_i32_0 = arith.constant 0 : i32
    return %c0_i32, %arg0 : i32, i32
  }
  func.func @transform_3(%arg0: i32) -> (i32, i32) {
    %c0_i32 = arith.constant 0 : i32
    %c0_i32_0 = arith.constant 0 : i32
    return %c0_i32, %arg0 : i32, i32
  }
  func.func @transform_4(%arg0: i32) -> (i32, i32) {
    %c0_i32 = arith.constant 0 : i32
    %c0_i32_0 = arith.constant 0 : i32
    return %c0_i32, %arg0 : i32, i32
  }
  func.func @transform_5(%arg0: i32) -> (i32, i32) {
    %c0_i32 = arith.constant 0 : i32
    %c0_i32_0 = arith.constant 0 : i32
    return %arg0, %c0_i32 : i32, i32
  }
  func.func @transform_6(%arg0: i32) -> (i32, i32) {
    %c0_i32 = arith.constant 0 : i32
    %c0_i32_0 = arith.constant 0 : i32
    %c0_i32_1 = arith.constant 0 : i32
    return %c0_i32, %c0_i32_0 : i32, i32
  }
  func.func @transform_7(%arg0: i32) -> (i32, i32) {
    %c0_i32 = arith.constant 0 : i32
    %c0_i32_0 = arith.constant 0 : i32
    %c0_i32_1 = arith.constant 0 : i32
    return %c0_i32, %c0_i32_0 : i32, i32
  }
  func.func @transform_8(%arg0: i32) -> (i32, i32) {
    %c0_i32 = arith.constant 0 : i32
    %c0_i32_0 = arith.constant 0 : i32
    %c0_i32_1 = arith.constant 0 : i32
    return %c0_i32, %c0_i32_0 : i32, i32
  }
  func.func @transform_9(%arg0: i32) -> (i32, i32) {
    %c0_i32 = arith.constant 0 : i32
    %c0_i32_0 = arith.constant 0 : i32
    %c0_i32_1 = arith.constant 0 : i32
    return %c0_i32, %c0_i32_0 : i32, i32
  }
}

</mosaic_0001>

<llo_original>
// kernel: tpu_custom_call.1
$region0: #{tpu_custom_call.1}
  #allocation0 [shape = 'u32[]', space=smem, size = 0x4, offset = 0x4, fixed_abs, tag = 'smem constant byte address 0x4 - core index']
  #allocation1 [shape = 'u32[144,128]{1,0:T(1,128)}', space=vmem, size = 0x12000, scoped, tag = 'internal scratch']
  %s0 = inlined_call_operand.hbm [shape: bf16[8,512], index: 0, kind: input, shape index: {}]
  %s1 = inlined_call_operand.hbm [shape: bf16[512,1024], index: 1, kind: input, shape index: {}]
  %s2 = inlined_call_operand.hbm [shape: f32[1,1024], index: 2, kind: input, shape index: {}]
  %s3 = inlined_call_operand.hbm [shape: f32[1,1024], index: 3, kind: input, shape index: {}]
  %s4 = inlined_call_operand.hbm [shape: f32[1,1024], index: 4, kind: input, shape index: {}]
  %s5 = inlined_call_operand.hbm [shape: bf16[1024,128], index: 5, kind: input, shape index: {}]
  %s6 = inlined_call_operand.vmem [shape: f32[1,128], index: 6, kind: input, shape index: {}]
  %s7 = inlined_call_operand.vmem [shape: f32[1,128], index: 7, kind: input, shape index: {}]
  %s8 = inlined_call_operand.vmem [shape: f32[1,128], index: 8, kind: input, shape index: {}]
  %s9 = inlined_call_operand.hbm [shape: f32[8,128], index: 9, kind: output, shape index: {}]
  %s10 = sld [smem:[#allocation0]]
  $region101: #{tpu_custom_call.1} parent=0
    _
  %s12 = ssub.s32 1, %s10
  %s13 = scalar_select 0, %s12, %s10
  $region1: #{tpu_custom_call.1} parent=0
    #allocation2 [shape = 'u8[8192]{0}', space=vmem, size = 0x2000, scoped, tag = 'input window, operand 0, single buffered']
    #allocation3 [shape = 's32[2]{0}', space=sflag, size = 0x8, scoped, tag = 'scoped memory for tpu_custom_call.1']
    #allocation4 [shape = 's32[2]{0}', space=sflag, size = 0x8, scoped, tag = 'scoped memory for tpu_custom_call.1']
    #allocation5 [shape = 'u8[1048576]{0}', space=vmem, size = 0x100000, scoped, tag = 'input window, operand 1']
    #allocation6 [shape = 's32[2]{0}', space=sflag, size = 0x8, scoped, tag = 'scoped memory for tpu_custom_call.1']
    #allocation7 [shape = 'u8[4096]{0}', space=vmem, size = 0x1000, scoped, tag = 'input window, operand 2']
    #allocation8 [shape = 'u8[4096]{0}', space=vmem, size = 0x1000, scoped, tag = 'input window, operand 3']
    #allocation9 [shape = 's32[2]{0}', space=sflag, size = 0x8, scoped, tag = 'scoped memory for tpu_custom_call.1']
    #allocation10 [shape = 'u8[4096]{0}', space=vmem, size = 0x1000, scoped, tag = 'input window, operand 4']
    #allocation11 [shape = 'u8[262144]{0}', space=vmem, size = 0x40000, scoped, tag = 'input window, operand 5']
    #allocation12 [shape = 's32[2]{0}', space=sflag, size = 0x8, scoped, tag = 'scoped memory for tpu_custom_call.1']
    #allocation13 [shape = 'u8[4096]{0}', space=vmem, size = 0x1000, scoped, tag = 'output window, operand 0, single buffered']
    %14 = vsyncpa [#allocation3], 0
    %15 = vsyncpa [#allocation6], 0
    %s16 = scalar_lea.sflag [#allocation6], 1
    %17 = vsyncpa %s16, 0
    %18 = vsyncpa [#allocation9], 0
    %s19 = scalar_lea.sflag [#allocation9], 1
    %20 = vsyncpa %s19, 0
    %21 = vsyncpa [#allocation12], 0
    %s22 = scalar_lea.sflag [#allocation12], 1
    %23 = vsyncpa %s22, 0
    %24 = vsyncpa [#allocation4], 0
    loop: start=0, step=1, limit=4
    $region2: #{tpu_custom_call.1} parent=1 // loop_pre_header
      _
    $region3: #{tpu_custom_call.1} parent=1 // loop_header
      %s26 = sphi 0, %s30
      %p27 = scmp.ge.s32.totalorder %s26, 4
      %s34 = sphi 0, %s34
      %s36 = sphi 0, %s34
      %s37 = sphi 0, %s36
      %s51 = sphi 0, %s37
      %s57 = sphi 0, %s59
      %s60 = sphi 0, %s57
      %s61 = sphi 0, %s60
      %s77 = sphi 0, %s61
      %s83 = sphi 0, %s85
      %s86 = sphi 0, %s83
      %s87 = sphi 0, %s86
      %s103 = sphi 0, %s87
      %s109 = sphi 0, %s111
      %s112 = sphi 0, %s109
      %s113 = sphi 0, %s112
      %s129 = sphi 0, %s113
      %s135 = sphi 0, %s137
      %s138 = sphi 0, %s135
      %s139 = sphi 0, %s138
      %s155 = sphi 0, %s139
      %s161 = sphi 0, %s163
      %s164 = sphi 0, %s161
      %s165 = sphi 0, %s164
      %s181 = sphi 0, %s165
      %s185 = sphi 0, %s185
      %s187 = sphi 0, %s185
      %s188 = sphi 0, %s187
      %s202 = sphi 0, %s188
      %s206 = sphi 0, %s206
      %s208 = sphi 0, %s206
      %s209 = sphi 0, %s208
      %s223 = sphi 0, %s209
      %s227 = sphi 0, %s227
      %s229 = sphi 0, %s227
      %s230 = sphi 0, %s229
      %s244 = sphi 0, %s230
      %s248 = sphi 0, %s248
      %s250 = sphi 0, %s248
      %s251 = sphi 0, %s250
      %s265 = sphi 0, %s251
    $region4: #{tpu_custom_call.1} parent=1 // loop_header_branch
      %29 = sbr.rel (%p27) target = $region8
    $region5: #{tpu_custom_call.1} parent=1 // loop_body
      %s31 = ssub.s32 %s26, 1
      %s32 = ssub.s32 %s26, 2
      %s33 = sadd.s32 %s26, 1
      %s35 = sadd.s32 %s34, 1
      %p38 = scmp.eq.s32.totalorder %s26, 1
      %p39 = scmp.ne.s32.totalorder %s34, %s36
      %p40 = scmp.eq.s32.totalorder %s26, 0
      %p41 = por %p39, %p40
      %p42 = scmp.ne.s32.totalorder %s34, %s36
      %p43 = scmp.eq.s32.totalorder %s31, 1
      %p44 = por %p42, %p43
      %p45 = scmp.ne.s32.totalorder %s36, %s37
      %p46 = scmp.eq.s32.totalorder %s31, 0
      %p47 = por %p45, %p46
      %p48 = scmp.ne.s32.totalorder %s36, %s37
      %p49 = scmp.eq.s32.totalorder %s32, 1
      %p50 = por %p48, %p49
      %p52 = scmp.ne.s32.totalorder %s37, %s51
      %p53 = scmp.eq.s32.totalorder %s32, 0
      %p54 = por %p52, %p53
      %s55 = ssub.s32 %s26, %s33
      %p56 = scmp.eq.s32.totalorder %s55, 0
      %s58 = sadd.s32 %s57, 1
      %s59 = scalar_select %p56, %s57, %s58
      %p62 = pneg %p56
      %p63 = scmp.eq.s32.totalorder %s26, 1
      %p64 = por %p62, %p63
      %p65 = scmp.ne.s32.totalorder %s57, %s60
      %p66 = scmp.eq.s32.totalorder %s26, 0
      %p67 = por %p65, %p66
      %p68 = scmp.ne.s32.totalorder %s57, %s60
      %p69 = scmp.eq.s32.totalorder %s31, 1
      %p70 = por %p68, %p69
      %p71 = scmp.ne.s32.totalorder %s60, %s61
      %p72 = scmp.eq.s32.totalorder %s31, 0
      %p73 = por %p71, %p72
      %p74 = scmp.ne.s32.totalorder %s60, %s61
      %p75 = scmp.eq.s32.totalorder %s32, 1
      %p76 = por %p74, %p75
      %p78 = scmp.ne.s32.totalorder %s61, %s77
      %p79 = scmp.eq.s32.totalorder %s32, 0
      %p80 = por %p78, %p79
      %s81 = ssub.s32 %s26, %s33
      %p82 = scmp.eq.s32.totalorder %s81, 0
      %s84 = sadd.s32 %s83, 1
      %s85 = scalar_select %p82, %s83, %s84
      %p88 = pneg %p82
      %p89 = scmp.eq.s32.totalorder %s26, 1
      %p90 = por %p88, %p89
      %p91 = scmp.ne.s32.totalorder %s83, %s86
      %p92 = scmp.eq.s32.totalorder %s26, 0
      %p93 = por %p91, %p92
      %p94 = scmp.ne.s32.totalorder %s83, %s86
      %p95 = scmp.eq.s32.totalorder %s31, 1
      %p96 = por %p94, %p95
      %p97 = scmp.ne.s32.totalorder %s86, %s87
      %p98 = scmp.eq.s32.totalorder %s31, 0
      %p99 = por %p97, %p98
      %p100 = scmp.ne.s32.totalorder %s86, %s87
      %p101 = scmp.eq.s32.totalorder %s32, 1
      %p102 = por %p100, %p101
      %p104 = scmp.ne.s32.totalorder %s87, %s103
      %p105 = scmp.eq.s32.totalorder %s32, 0
      %p106 = por %p104, %p105
      %s107 = ssub.s32 %s26, %s33
      %p108 = scmp.eq.s32.totalorder %s107, 0
      %s110 = sadd.s32 %s109, 1
      %s111 = scalar_select %p108, %s109, %s110
      %p114 = pneg %p108
      %p115 = scmp.eq.s32.totalorder %s26, 1
      %p116 = por %p114, %p115
      %p117 = scmp.ne.s32.totalorder %s109, %s112
      %p118 = scmp.eq.s32.totalorder %s26, 0
      %p119 = por %p117, %p118
      %p120 = scmp.ne.s32.totalorder %s109, %s112
      %p121 = scmp.eq.s32.totalorder %s31, 1
      %p122 = por %p120, %p121
      %p123 = scmp.ne.s32.totalorder %s112, %s113
      %p124 = scmp.eq.s32.totalorder %s31, 0
      %p125 = por %p123, %p124
      %p126 = scmp.ne.s32.totalorder %s112, %s113
      %p127 = scmp.eq.s32.totalorder %s32, 1
      %p128 = por %p126, %p127
      %p130 = scmp.ne.s32.totalorder %s113, %s129
      %p131 = scmp.eq.s32.totalorder %s32, 0
      %p132 = por %p130, %p131
      %s133 = ssub.s32 %s26, %s33
      %p134 = scmp.eq.s32.totalorder %s133, 0
      %s136 = sadd.s32 %s135, 1
      %s137 = scalar_select %p134, %s135, %s136
      %p140 = pneg %p134
      %p141 = scmp.eq.s32.totalorder %s26, 1
      %p142 = por %p140, %p141
      %p143 = scmp.ne.s32.totalorder %s135, %s138
      %p144 = scmp.eq.s32.totalorder %s26, 0
      %p145 = por %p143, %p144
      %p146 = scmp.ne.s32.totalorder %s135, %s138
      %p147 = scmp.eq.s32.totalorder %s31, 1
      %p148 = por %p146, %p147
      %p149 = scmp.ne.s32.totalorder %s138, %s139
      %p150 = scmp.eq.s32.totalorder %s31, 0
      %p151 = por %p149, %p150
      %p152 = scmp.ne.s32.totalorder %s138, %s139
      %p153 = scmp.eq.s32.totalorder %s32, 1
      %p154 = por %p152, %p153
      %p156 = scmp.ne.s32.totalorder %s139, %s155
      %p157 = scmp.eq.s32.totalorder %s32, 0
      %p158 = por %p156, %p157
      %s159 = ssub.s32 %s26, %s33
      %p160 = scmp.eq.s32.totalorder %s159, 0
      %s162 = sadd.s32 %s161, 1
      %s163 = scalar_select %p160, %s161, %s162
      %p166 = pneg %p160
      %p167 = scmp.eq.s32.totalorder %s26, 1
      %p168 = por %p166, %p167
      %p169 = scmp.ne.s32.totalorder %s161, %s164
      %p170 = scmp.eq.s32.totalorder %s26, 0
      %p171 = por %p169, %p170
      %p172 = scmp.ne.s32.totalorder %s161, %s164
      %p173 = scmp.eq.s32.totalorder %s31, 1
      %p174 = por %p172, %p173
      %p175 = scmp.ne.s32.totalorder %s164, %s165
      %p176 = scmp.eq.s32.totalorder %s31, 0
      %p177 = por %p175, %p176
      %p178 = scmp.ne.s32.totalorder %s164, %s165
      %p179 = scmp.eq.s32.totalorder %s32, 1
      %p180 = por %p178, %p179
      %p182 = scmp.ne.s32.totalorder %s165, %s181
      %p183 = scmp.eq.s32.totalorder %s32, 0
      %p184 = por %p182, %p183
      %s186 = sadd.s32 %s185, 1
      %p189 = scmp.eq.s32.totalorder %s26, 1
      %p190 = scmp.ne.s32.totalorder %s185, %s187
      %p191 = scmp.eq.s32.totalorder %s26, 0
      %p192 = por %p190, %p191
      %p193 = scmp.ne.s32.totalorder %s185, %s187
      %p194 = scmp.eq.s32.totalorder %s31, 1
      %p195 = por %p193, %p194
      %p196 = scmp.ne.s32.totalorder %s187, %s188
      %p197 = scmp.eq.s32.totalorder %s31, 0
      %p198 = por %p196, %p197
      %p199 = scmp.ne.s32.totalorder %s187, %s188
      %p200 = scmp.eq.s32.totalorder %s32, 1
      %p201 = por %p199, %p200
      %p203 = scmp.ne.s32.totalorder %s188, %s202
      %p204 = scmp.eq.s32.totalorder %s32, 0
      %p205 = por %p203, %p204
      %s207 = sadd.s32 %s206, 1
      %p210 = scmp.eq.s32.totalorder %s26, 1
      %p211 = scmp.ne.s32.totalorder %s206, %s208
      %p212 = scmp.eq.s32.totalorder %s26, 0
      %p213 = por %p211, %p212
      %p214 = scmp.ne.s32.totalorder %s206, %s208
      %p215 = scmp.eq.s32.totalorder %s31, 1
      %p216 = por %p214, %p215
      %p217 = scmp.ne.s32.totalorder %s208, %s209
      %p218 = scmp.eq.s32.totalorder %s31, 0
      %p219 = por %p217, %p218
      %p220 = scmp.ne.s32.totalorder %s208, %s209
      %p221 = scmp.eq.s32.totalorder %s32, 1
      %p222 = por %p220, %p221
      %p224 = scmp.ne.s32.totalorder %s209, %s223
      %p225 = scmp.eq.s32.totalorder %s32, 0
      %p226 = por %p224, %p225
      %s228 = sadd.s32 %s227, 1
      %p231 = scmp.eq.s32.totalorder %s26, 1
      %p232 = scmp.ne.s32.totalorder %s227, %s229
      %p233 = scmp.eq.s32.totalorder %s26, 0
      %p234 = por %p232, %p233
      %p235 = scmp.ne.s32.totalorder %s227, %s229
      %p236 = scmp.eq.s32.totalorder %s31, 1
      %p237 = por %p235, %p236
      %p238 = scmp.ne.s32.totalorder %s229, %s230
      %p239 = scmp.eq.s32.totalorder %s31, 0
      %p240 = por %p238, %p239
      %p241 = scmp.ne.s32.totalorder %s229, %s230
      %p242 = scmp.eq.s32.totalorder %s32, 1
      %p243 = por %p241, %p242
      %p245 = scmp.ne.s32.totalorder %s230, %s244
      %p246 = scmp.eq.s32.totalorder %s32, 0
      %p247 = por %p245, %p246
      %s249 = sadd.s32 %s248, 1
      %p252 = scmp.eq.s32.totalorder %s26, 1
      %p253 = scmp.ne.s32.totalorder %s248, %s250
      %p254 = scmp.eq.s32.totalorder %s26, 0
      %p255 = por %p253, %p254
      %p256 = scmp.ne.s32.totalorder %s248, %s250
      %p257 = scmp.eq.s32.totalorder %s31, 1
      %p258 = por %p256, %p257
      %p259 = scmp.ne.s32.totalorder %s250, %s251
      %p260 = scmp.eq.s32.totalorder %s31, 0
      %p261 = por %p259, %p260
      %p262 = scmp.ne.s32.totalorder %s250, %s251
      %p263 = scmp.eq.s32.totalorder %s32, 1
      %p264 = por %p262, %p263
      %p266 = scmp.ne.s32.totalorder %s251, %s265
      %p267 = scmp.eq.s32.totalorder %s32, 0
      %p268 = por %p266, %p267
      %p269 = scmp.le.s32.totalorder 1, %s26
      %p270 = scmp.lt.s32.totalorder %s26, 3
      %p271 = pnand %p269, %p270
      %p272 = pneg %p271
      // Predicated region
      $region9: #{tpu_custom_call.1} parent=5 // pred_check
        _
      $region10: #{tpu_custom_call.1} parent=5 // pred_check_branch
        %274 = sbr.rel (%p271) target = $region12
      $region11: #{tpu_custom_call.1} parent=5 // pred_region
        %s275 = ssub.s32 %s26, 1
        // Predicated region
        $region13: #{tpu_custom_call.1} parent=11 // pred_check
          %p276 = pneg %p47
        $region14: #{tpu_custom_call.1} parent=11 // pred_check_branch
          %278 = sbr.rel (%p276) target = $region16
        $region15: #{tpu_custom_call.1} parent=11 // pred_region
          %s280 = ssub.s32 256, 256
          %281 = vsyncadd [#allocation3], %s280
          %s283 = sshll.u32 [#allocation2], 4
          %s284 = int_to_ptr.vmem [resolvable:$true] %s283
          %286 = dma.hbm_to_vmem [thread:$0]  %s0, 256, %s284, [#allocation3]
        $region16: #{tpu_custom_call.1} parent=11 // pred_fallthru
          _
        // Predicated region
        $region17: #{tpu_custom_call.1} parent=11 // pred_check
          %p287 = pneg %p198
        $region18: #{tpu_custom_call.1} parent=11 // pred_check_branch
          %289 = sbr.rel (%p287) target = $region20
        $region19: #{tpu_custom_call.1} parent=11 // pred_region
          _
        $region20: #{tpu_custom_call.1} parent=11 // pred_fallthru
          _
        // Predicated region
        $region21: #{tpu_custom_call.1} parent=11 // pred_check
          %p290 = pneg %p219
        $region22: #{tpu_custom_call.1} parent=11 // pred_check_branch
          %292 = sbr.rel (%p290) target = $region24
        $region23: #{tpu_custom_call.1} parent=11 // pred_region
          _
        $region24: #{tpu_custom_call.1} parent=11 // pred_fallthru
          _
        // Predicated region
        $region25: #{tpu_custom_call.1} parent=11 // pred_check
          %p293 = pneg %p240
        $region26: #{tpu_custom_call.1} parent=11 // pred_check_branch
          %295 = sbr.rel (%p293) target = $region28
        $region27: #{tpu_custom_call.1} parent=11 // pred_region
          _
        $region28: #{tpu_custom_call.1} parent=11 // pred_fallthru
          _
      $region12: #{tpu_custom_call.1} parent=5 // pred_fallthru
        _
      %p296 = scmp.lt.s32.totalorder %s26, 2
      // Predicated region
      $region29: #{tpu_custom_call.1} parent=5 // pred_check
        %p297 = pneg %p296
      $region30: #{tpu_custom_call.1} parent=5 // pred_check_branch
        %299 = sbr.rel (%p297) target = $region32
      $region31: #{tpu_custom_call.1} parent=5 // pred_region
        // Predicated region
        $region33: #{tpu_custom_call.1} parent=31 // pred_check
          %p300 = pneg %p67
        $region34: #{tpu_custom_call.1} parent=31 // pred_check_branch
          %302 = sbr.rel (%p300) target = $region36
        $region35: #{tpu_custom_call.1} parent=31 // pred_region
          %s303 = sand.u32 %s26, 1
          %s304 = scalar_lea.sflag [#allocation6], %s303
          %s305 = sand.u32 %s57, 1
          %s306 = smul.addr %s305, 1024
          %s307 = scalar_lea.vmem [#allocation5], %s306
          %s308 = smul.u32 4, %s26
          %s310 = ssub.s32 16384, 16384
          %311 = vsyncadd %s304, %s310
          %s312 = smul.addr %s308, 64
          %s313 = scalar_lea.hbm %s1, %s312
          %s314 = sshll.u32 %s307, 4
          %s315 = int_to_ptr.vmem [resolvable:$true] %s314
          %320 = dma.hbm_to_vmem [thread:$0]  %s313, 16384, %s315, %s304, 512, 256, 16
        $region36: #{tpu_custom_call.1} parent=31 // pred_fallthru
          _
        // Predicated region
        $region37: #{tpu_custom_call.1} parent=31 // pred_check
          %p321 = pneg %p93
        $region38: #{tpu_custom_call.1} parent=31 // pred_check_branch
          %323 = sbr.rel (%p321) target = $region40
        $region39: #{tpu_custom_call.1} parent=31 // pred_region
          %s324 = sand.u32 %s26, 1
          %s325 = scalar_lea.sflag [#allocation6], %s324
          %s326 = sand.u32 %s83, 1
          %s327 = smul.addr %s326, 4
          %s328 = scalar_lea.vmem [#allocation7], %s327
          %s329 = smul.u32 4, %s26
          %s331 = ssub.s32 64, 64
          %332 = vsyncadd %s325, %s331
          %s333 = smul.addr %s329, 16
          %s334 = scalar_lea.hbm %s2, %s333
          %s336 = sshll.u32 %s328, 4
          %s337 = int_to_ptr.vmem [resolvable:$true] %s336
          %339 = dma.hbm_to_vmem [thread:$0]  %s334, 64, %s337, %s325
        $region40: #{tpu_custom_call.1} parent=31 // pred_fallthru
          _
        // Predicated region
        $region41: #{tpu_custom_call.1} parent=31 // pred_check
          %p340 = pneg %p119
        $region42: #{tpu_custom_call.1} parent=31 // pred_check_branch
          %342 = sbr.rel (%p340) target = $region44
        $region43: #{tpu_custom_call.1} parent=31 // pred_region
          %s343 = sand.u32 %s26, 1
          %s344 = scalar_lea.sflag [#allocation9], %s343
          %s345 = sand.u32 %s109, 1
          %s346 = smul.addr %s345, 4
          %s347 = scalar_lea.vmem [#allocation8], %s346
          %s348 = smul.u32 4, %s26
          %s350 = ssub.s32 64, 64
          %351 = vsyncadd %s344, %s350
          %s352 = smul.addr %s348, 16
          %s353 = scalar_lea.hbm %s3, %s352
          %s355 = sshll.u32 %s347, 4
          %s356 = int_to_ptr.vmem [resolvable:$true] %s355
          %358 = dma.hbm_to_vmem [thread:$0]  %s353, 64, %s356, %s344
        $region44: #{tpu_custom_call.1} parent=31 // pred_fallthru
          _
        // Predicated region
        $region45: #{tpu_custom_call.1} parent=31 // pred_check
          %p359 = pneg %p145
        $region46: #{tpu_custom_call.1} parent=31 // pred_check_branch
          %361 = sbr.rel (%p359) target = $region48
        $region47: #{tpu_custom_call.1} parent=31 // pred_region
          %s362 = sand.u32 %s26, 1
          %s363 = scalar_lea.sflag [#allocation9], %s362
          %s364 = sand.u32 %s135, 1
          %s365 = smul.addr %s364, 4
          %s366 = scalar_lea.vmem [#allocation10], %s365
          %s367 = smul.u32 4, %s26
          %s369 = ssub.s32 64, 64
          %370 = vsyncadd %s363, %s369
          %s371 = smul.addr %s367, 16
          %s372 = scalar_lea.hbm %s4, %s371
          %s374 = sshll.u32 %s366, 4
          %s375 = int_to_ptr.vmem [resolvable:$true] %s374
          %377 = dma.hbm_to_vmem [thread:$0]  %s372, 64, %s375, %s363
        $region48: #{tpu_custom_call.1} parent=31 // pred_fallthru
          _
        // Predicated region
        $region49: #{tpu_custom_call.1} parent=31 // pred_check
          %p378 = pneg %p171
        $region50: #{tpu_custom_call.1} parent=31 // pred_check_branch
          %380 = sbr.rel (%p378) target = $region52
        $region51: #{tpu_custom_call.1} parent=31 // pred_region
          %s381 = sand.u32 %s161, 1
          %s382 = scalar_lea.sflag [#allocation12], %s381
          %s383 = sand.u32 %s161, 1
          %s384 = smul.addr %s383, 256
          %s385 = scalar_lea.vmem [#allocation11], %s384
          %s386 = smul.u32 64, %s26
          %s388 = ssub.s32 4096, 4096
          %389 = vsyncadd %s382, %s388
          %s390 = smul.addr %s386, 64
          %s391 = scalar_lea.hbm %s5, %s390
          %s392 = sshll.u32 %s385, 4
          %s393 = int_to_ptr.vmem [resolvable:$true] %s392
          %398 = dma.hbm_to_vmem [thread:$0]  %s391, 4096, %s393, %s382, 64, 64, 4
        $region52: #{tpu_custom_call.1} parent=31 // pred_fallthru
          _
      $region32: #{tpu_custom_call.1} parent=5 // pred_fallthru
        _
      %p399 = scmp.le.s32.totalorder 1, %s26
      %p400 = scmp.lt.s32.totalorder %s26, 3
      %p401 = pnand %p399, %p400
      %p402 = pneg %p401
      // Predicated region
      $region53: #{tpu_custom_call.1} parent=5 // pred_check
        _
      $region54: #{tpu_custom_call.1} parent=5 // pred_check_branch
        %404 = sbr.rel (%p401) target = $region56
      $region55: #{tpu_custom_call.1} parent=5 // pred_region
        %s405 = ssub.s32 %s26, 1
        // Predicated region
        $region57: #{tpu_custom_call.1} parent=55 // pred_check
          %p406 = pneg %p47
        $region58: #{tpu_custom_call.1} parent=55 // pred_check_branch
          %408 = sbr.rel (%p406) target = $region60
        $region59: #{tpu_custom_call.1} parent=55 // pred_region
          %409 = dma.done [#allocation3], 256
        $region60: #{tpu_custom_call.1} parent=55 // pred_fallthru
          _
        %s410 = sand.u32 %s31, 1
        %s411 = scalar_lea.sflag [#allocation6], %s410
        %s412 = sand.u32 %s60, 1
        %s413 = smul.addr %s412, 1024
        %s414 = scalar_lea.vmem [#allocation5], %s413
        // Predicated region
        $region61: #{tpu_custom_call.1} parent=55 // pred_check
          %p415 = pneg %p73
        $region62: #{tpu_custom_call.1} parent=55 // pred_check_branch
          %417 = sbr.rel (%p415) target = $region64
        $region63: #{tpu_custom_call.1} parent=55 // pred_region
          %418 = dma.done %s411, 16384
        $region64: #{tpu_custom_call.1} parent=55 // pred_fallthru
          _
        %s419 = sand.u32 %s31, 1
        %s420 = scalar_lea.sflag [#allocation6], %s419
        %s421 = sand.u32 %s86, 1
        %s422 = smul.addr %s421, 4
        %s423 = scalar_lea.vmem [#allocation7], %s422
        // Predicated region
        $region65: #{tpu_custom_call.1} parent=55 // pred_check
          %p424 = pneg %p99
        $region66: #{tpu_custom_call.1} parent=55 // pred_check_branch
          %426 = sbr.rel (%p424) target = $region68
        $region67: #{tpu_custom_call.1} parent=55 // pred_region
          %427 = dma.done %s420, 64
        $region68: #{tpu_custom_call.1} parent=55 // pred_fallthru
          _
        %s428 = sand.u32 %s31, 1
        %s429 = scalar_lea.sflag [#allocation9], %s428
        %s430 = sand.u32 %s112, 1
        %s431 = smul.addr %s430, 4
        %s432 = scalar_lea.vmem [#allocation8], %s431
        // Predicated region
        $region69: #{tpu_custom_call.1} parent=55 // pred_check
          %p433 = pneg %p125
        $region70: #{tpu_custom_call.1} parent=55 // pred_check_branch
          %435 = sbr.rel (%p433) target = $region72
        $region71: #{tpu_custom_call.1} parent=55 // pred_region
          %436 = dma.done %s429, 64
        $region72: #{tpu_custom_call.1} parent=55 // pred_fallthru
          _
        %s437 = sand.u32 %s31, 1
        %s438 = scalar_lea.sflag [#allocation9], %s437
        %s439 = sand.u32 %s138, 1
        %s440 = smul.addr %s439, 4
        %s441 = scalar_lea.vmem [#allocation10], %s440
        // Predicated region
        $region73: #{tpu_custom_call.1} parent=55 // pred_check
          %p442 = pneg %p151
        $region74: #{tpu_custom_call.1} parent=55 // pred_check_branch
          %444 = sbr.rel (%p442) target = $region76
        $region75: #{tpu_custom_call.1} parent=55 // pred_region
          %445 = dma.done %s438, 64
        $region76: #{tpu_custom_call.1} parent=55 // pred_fallthru
          _
        %s446 = sand.u32 %s164, 1
        %s447 = scalar_lea.sflag [#allocation12], %s446
        %s448 = sand.u32 %s164, 1
        %s449 = smul.addr %s448, 256
        %s450 = scalar_lea.vmem [#allocation11], %s449
        // Predicated region
        $region77: #{tpu_custom_call.1} parent=55 // pred_check
          %p451 = pneg %p177
        $region78: #{tpu_custom_call.1} parent=55 // pred_check_branch
          %453 = sbr.rel (%p451) target = $region80
        $region79: #{tpu_custom_call.1} parent=55 // pred_region
          %454 = dma.done %s447, 4096
        $region80: #{tpu_custom_call.1} parent=55 // pred_fallthru
          _
        %p455 = pneg %p47
        %p456 = pneg %p44
        %s457 = sand.u32 %s31, 1
        %s458 = scalar_lea.sflag [#allocation6], %s457
        %s459 = sand.u32 %s60, 1
        %s460 = smul.addr %s459, 1024
        %s461 = scalar_lea.vmem [#allocation5], %s460
        %p462 = pneg %p73
        %p463 = pneg %p70
        %s464 = sand.u32 %s31, 1
        %s465 = scalar_lea.sflag [#allocation6], %s464
        %s466 = sand.u32 %s86, 1
        %s467 = smul.addr %s466, 4
        %s468 = scalar_lea.vmem [#allocation7], %s467
        %p469 = pneg %p99
        %p470 = pneg %p96
        %s471 = sand.u32 %s31, 1
        %s472 = scalar_lea.sflag [#allocation9], %s471
        %s473 = sand.u32 %s112, 1
        %s474 = smul.addr %s473, 4
        %s475 = scalar_lea.vmem [#allocation8], %s474
        %p476 = pneg %p125
        %p477 = pneg %p122
        %s478 = sand.u32 %s31, 1
        %s479 = scalar_lea.sflag [#allocation9], %s478
        %s480 = sand.u32 %s138, 1
        %s481 = smul.addr %s480, 4
        %s482 = scalar_lea.vmem [#allocation10], %s481
        %p483 = pneg %p151
        %p484 = pneg %p148
        %s485 = sand.u32 %s164, 1
        %s486 = scalar_lea.sflag [#allocation12], %s485
        %s487 = sand.u32 %s164, 1
        %s488 = smul.addr %s487, 256
        %s489 = scalar_lea.vmem [#allocation11], %s488
        %p490 = pneg %p177
        %p491 = pneg %p174
        %p492 = pneg %p198
        %p493 = pneg %p195
        %p494 = pneg %p219
        %p495 = pneg %p216
        %p496 = pneg %p240
        %p497 = pneg %p237
        %p498 = pneg %p261
        %p499 = pneg %p258
        %s500 = smul.u32 4, %s31
        %s501 = smul.u32 4, %s31
        %s502 = smul.u32 4, %s31
        %s503 = smul.u32 4, %s31
        %s504 = smul.u32 64, %s31
        %p506 = scmp.eq.s32.totalorder %s31, 0
        // Predicated region
        $region81: #{tpu_custom_call.1} parent=55 // pred_check
          %p507 = pneg %p506
        $region82: #{tpu_custom_call.1} parent=55 // pred_check_branch
          %509 = sbr.rel (%p507) target = $region84
        $region83: #{tpu_custom_call.1} parent=55 // pred_region
          %510 = vst [vmem:[#allocation13] sm:$0xff] 0.0
        $region84: #{tpu_custom_call.1} parent=55 // pred_fallthru
          _
        %v511 = vld [vmem:[#allocation2] sm:$0xff]
        %v512 = vld [vmem:[#allocation2 + $0x8] sm:$0xff]
        %v513 = vld [vmem:[%s414] sm:$0xff]
        %v514 = vld [vmem:[%s414 + $0x8] sm:$0xff]
        %v515 = vld [vmem:[%s414 + $0x10] sm:$0xff]
        %v516 = vld [vmem:[%s414 + $0x18] sm:$0xff]
        %v517 = vld [vmem:[%s414 + $0x20] sm:$0xff]
        %v518 = vld [vmem:[%s414 + $0x28] sm:$0xff]
        %v519 = vld [vmem:[%s414 + $0x30] sm:$0xff]
        %v520 = vld [vmem:[%s414 + $0x38] sm:$0xff]
        %v521 = vld [vmem:[%s414 + $0x40] sm:$0xff]
        %v522 = vld [vmem:[%s414 + $0x48] sm:$0xff]
        %v523 = vld [vmem:[%s414 + $0x50] sm:$0xff]
        %v524 = vld [vmem:[%s414 + $0x58] sm:$0xff]
        %v525 = vld [vmem:[%s414 + $0x60] sm:$0xff]
        %v526 = vld [vmem:[%s414 + $0x68] sm:$0xff]
        %v527 = vld [vmem:[%s414 + $0x70] sm:$0xff]
        %v528 = vld [vmem:[%s414 + $0x78] sm:$0xff]
        %v529 = vld [vmem:[%s414 + $0x80] sm:$0xff]
        %v530 = vld [vmem:[%s414 + $0x88] sm:$0xff]
        %v531 = vld [vmem:[%s414 + $0x90] sm:$0xff]
        %v532 = vld [vmem:[%s414 + $0x98] sm:$0xff]
        %v533 = vld [vmem:[%s414 + $0xa0] sm:$0xff]
        %v534 = vld [vmem:[%s414 + $0xa8] sm:$0xff]
        %v535 = vld [vmem:[%s414 + $0xb0] sm:$0xff]
        %v536 = vld [vmem:[%s414 + $0xb8] sm:$0xff]
        %v537 = vld [vmem:[%s414 + $0xc0] sm:$0xff]
        %v538 = vld [vmem:[%s414 + $0xc8] sm:$0xff]
        %v539 = vld [vmem:[%s414 + $0xd0] sm:$0xff]
        %v540 = vld [vmem:[%s414 + $0xd8] sm:$0xff]
        %v541 = vld [vmem:[%s414 + $0xe0] sm:$0xff]
        %v542 = vld [vmem:[%s414 + $0xe8] sm:$0xff]
        %v543 = vld [vmem:[%s414 + $0xf0] sm:$0xff]
        %v544 = vld [vmem:[%s414 + $0xf8] sm:$0xff]
        %v545 = vld [vmem:[%s414 + $0x100] sm:$0xff]
        %v546 = vld [vmem:[%s414 + $0x108] sm:$0xff]
        %v547 = vld [vmem:[%s414 + $0x110] sm:$0xff]
        %v548 = vld [vmem:[%s414 + $0x118] sm:$0xff]
        %v549 = vld [vmem:[%s414 + $0x120] sm:$0xff]
        %v550 = vld [vmem:[%s414 + $0x128] sm:$0xff]
        %v551 = vld [vmem:[%s414 + $0x130] sm:$0xff]
        %v552 = vld [vmem:[%s414 + $0x138] sm:$0xff]
        %v553 = vld [vmem:[%s414 + $0x140] sm:$0xff]
        %v554 = vld [vmem:[%s414 + $0x148] sm:$0xff]
        %v555 = vld [vmem:[%s414 + $0x150] sm:$0xff]
        %v556 = vld [vmem:[%s414 + $0x158] sm:$0xff]
        %v557 = vld [vmem:[%s414 + $0x160] sm:$0xff]
        %v558 = vld [vmem:[%s414 + $0x168] sm:$0xff]
        %v559 = vld [vmem:[%s414 + $0x170] sm:$0xff]
        %v560 = vld [vmem:[%s414 + $0x178] sm:$0xff]
        %v561 = vld [vmem:[%s414 + $0x180] sm:$0xff]
        %v562 = vld [vmem:[%s414 + $0x188] sm:$0xff]
        %v563 = vld [vmem:[%s414 + $0x190] sm:$0xff]
        %v564 = vld [vmem:[%s414 + $0x198] sm:$0xff]
        %v565 = vld [vmem:[%s414 + $0x1a0] sm:$0xff]
        %v566 = vld [vmem:[%s414 + $0x1a8] sm:$0xff]
        %v567 = vld [vmem:[%s414 + $0x1b0] sm:$0xff]
        %v568 = vld [vmem:[%s414 + $0x1b8] sm:$0xff]
        %v569 = vld [vmem:[%s414 + $0x1c0] sm:$0xff]
        %v570 = vld [vmem:[%s414 + $0x1c8] sm:$0xff]
        %v571 = vld [vmem:[%s414 + $0x1d0] sm:$0xff]
        %v572 = vld [vmem:[%s414 + $0x1d8] sm:$0xff]
        %v573 = vld [vmem:[%s414 + $0x1e0] sm:$0xff]
        %v574 = vld [vmem:[%s414 + $0x1e8] sm:$0xff]
        %v575 = vld [vmem:[%s414 + $0x1f0] sm:$0xff]
        %v576 = vld [vmem:[%s414 + $0x1f8] sm:$0xff]
        %v577 = vld [vmem:[%s414 + $0x200] sm:$0xff]
        %v578 = vld [vmem:[%s414 + $0x208] sm:$0xff]
        %v579 = vld [vmem:[%s414 + $0x210] sm:$0xff]
        %v580 = vld [vmem:[%s414 + $0x218] sm:$0xff]
        %v581 = vld [vmem:[%s414 + $0x220] sm:$0xff]
        %v582 = vld [vmem:[%s414 + $0x228] sm:$0xff]
        %v583 = vld [vmem:[%s414 + $0x230] sm:$0xff]
        %v584 = vld [vmem:[%s414 + $0x238] sm:$0xff]
        %v585 = vld [vmem:[%s414 + $0x240] sm:$0xff]
        %v586 = vld [vmem:[%s414 + $0x248] sm:$0xff]
        %v587 = vld [vmem:[%s414 + $0x250] sm:$0xff]
        %v588 = vld [vmem:[%s414 + $0x258] sm:$0xff]
        %v589 = vld [vmem:[%s414 + $0x260] sm:$0xff]
        %v590 = vld [vmem:[%s414 + $0x268] sm:$0xff]
        %v591 = vld [vmem:[%s414 + $0x270] sm:$0xff]
        %v592 = vld [vmem:[%s414 + $0x278] sm:$0xff]
        %v593 = vld [vmem:[%s414 + $0x280] sm:$0xff]
        %v594 = vld [vmem:[%s414 + $0x288] sm:$0xff]
        %v595 = vld [vmem:[%s414 + $0x290] sm:$0xff]
        %v596 = vld [vmem:[%s414 + $0x298] sm:$0xff]
        %v597 = vld [vmem:[%s414 + $0x2a0] sm:$0xff]
        %v598 = vld [vmem:[%s414 + $0x2a8] sm:$0xff]
        %v599 = vld [vmem:[%s414 + $0x2b0] sm:$0xff]
        %v600 = vld [vmem:[%s414 + $0x2b8] sm:$0xff]
        %v601 = vld [vmem:[%s414 + $0x2c0] sm:$0xff]
        %v602 = vld [vmem:[%s414 + $0x2c8] sm:$0xff]
        %v603 = vld [vmem:[%s414 + $0x2d0] sm:$0xff]
        %v604 = vld [vmem:[%s414 + $0x2d8] sm:$0xff]
        %v605 = vld [vmem:[%s414 + $0x2e0] sm:$0xff]
        %v606 = vld [vmem:[%s414 + $0x2e8] sm:$0xff]
        %v607 = vld [vmem:[%s414 + $0x2f0] sm:$0xff]
        %v608 = vld [vmem:[%s414 + $0x2f8] sm:$0xff]
        %v609 = vld [vmem:[%s414 + $0x300] sm:$0xff]
        %v610 = vld [vmem:[%s414 + $0x308] sm:$0xff]
        %v611 = vld [vmem:[%s414 + $0x310] sm:$0xff]
        %v612 = vld [vmem:[%s414 + $0x318] sm:$0xff]
        %v613 = vld [vmem:[%s414 + $0x320] sm:$0xff]
        %v614 = vld [vmem:[%s414 + $0x328] sm:$0xff]
        %v615 = vld [vmem:[%s414 + $0x330] sm:$0xff]
        %v616 = vld [vmem:[%s414 + $0x338] sm:$0xff]
        %v617 = vld [vmem:[%s414 + $0x340] sm:$0xff]
        %v618 = vld [vmem:[%s414 + $0x348] sm:$0xff]
        %v619 = vld [vmem:[%s414 + $0x350] sm:$0xff]
        %v620 = vld [vmem:[%s414 + $0x358] sm:$0xff]
        %v621 = vld [vmem:[%s414 + $0x360] sm:$0xff]
        %v622 = vld [vmem:[%s414 + $0x368] sm:$0xff]
        %v623 = vld [vmem:[%s414 + $0x370] sm:$0xff]
        %v624 = vld [vmem:[%s414 + $0x378] sm:$0xff]
        %v625 = vld [vmem:[%s414 + $0x380] sm:$0xff]
        %v626 = vld [vmem:[%s414 + $0x388] sm:$0xff]
        %v627 = vld [vmem:[%s414 + $0x390] sm:$0xff]
        %v628 = vld [vmem:[%s414 + $0x398] sm:$0xff]
        %v629 = vld [vmem:[%s414 + $0x3a0] sm:$0xff]
        %v630 = vld [vmem:[%s414 + $0x3a8] sm:$0xff]
        %v631 = vld [vmem:[%s414 + $0x3b0] sm:$0xff]
        %v632 = vld [vmem:[%s414 + $0x3b8] sm:$0xff]
        %v633 = vld [vmem:[%s414 + $0x3c0] sm:$0xff]
        %v634 = vld [vmem:[%s414 + $0x3c8] sm:$0xff]
        %v635 = vld [vmem:[%s414 + $0x3d0] sm:$0xff]
        %v636 = vld [vmem:[%s414 + $0x3d8] sm:$0xff]
        %v637 = vld [vmem:[%s414 + $0x3e0] sm:$0xff]
        %v638 = vld [vmem:[%s414 + $0x3e8] sm:$0xff]
        %v639 = vld [vmem:[%s414 + $0x3f0] sm:$0xff]
        %v640 = vld [vmem:[%s414 + $0x3f8] sm:$0xff]
        %v641 = vld [vmem:[%s423] sm:$0xf]
        %v643 = vlaneseq
        %v644 = vshrl.u32 %v643, 7
        %v645 = vsub.s32 0, %v644
        %v646 = vrot.slane %v641, %v645
        %v647 = vlaneseq
        %v648 = vshrl.u32 %v647, 7
        %v649 = vsub.s32 1, %v648
        %v650 = vrot.slane %v641, %v649
        %v651 = vlaneseq
        %v652 = vshrl.u32 %v651, 7
        %v653 = vsub.s32 2, %v652
        %v654 = vrot.slane %v641, %v653
        %v655 = vlaneseq
        %v656 = vshrl.u32 %v655, 7
        %v657 = vsub.s32 3, %v656
        %v658 = vrot.slane %v641, %v657
        %v665 = vunpack.c.l.b16 %v511
        %v666 = vunpack.c.h.b16 %v511
        %v667 = vunpack.c.l.b16 %v512
        %v668 = vunpack.c.h.b16 %v512
        %v669 = vpack.c.b16 %v665, %v665
        %v670 = vpack.c.b16 %v666, %v666
        %v671 = vpack.c.b16 %v667, %v667
        %v672 = vpack.c.b16 %v668, %v668
        %v805 = vunpack.c.l.b16 %v513
        %v806 = vunpack.c.h.b16 %v513
        %v807 = vunpack.c.l.b16 %v514
        %v808 = vunpack.c.h.b16 %v514
        %v809 = vunpack.c.l.b16 %v515
        %v810 = vunpack.c.h.b16 %v515
        %v811 = vunpack.c.l.b16 %v516
        %v812 = vunpack.c.h.b16 %v516
        %v813 = vunpack.c.l.b16 %v517
        %v814 = vunpack.c.h.b16 %v517
        %v815 = vunpack.c.l.b16 %v518
        %v816 = vunpack.c.h.b16 %v518
        %v817 = vunpack.c.l.b16 %v519
        %v818 = vunpack.c.h.b16 %v519
        %v819 = vunpack.c.l.b16 %v520
        %v820 = vunpack.c.h.b16 %v520
        %v821 = vunpack.c.l.b16 %v521
        %v822 = vunpack.c.h.b16 %v521
        %v823 = vunpack.c.l.b16 %v522
        %v824 = vunpack.c.h.b16 %v522
        %v825 = vunpack.c.l.b16 %v523
        %v826 = vunpack.c.h.b16 %v523
        %v827 = vunpack.c.l.b16 %v524
        %v828 = vunpack.c.h.b16 %v524
        %v829 = vunpack.c.l.b16 %v525
        %v830 = vunpack.c.h.b16 %v525
        %v831 = vunpack.c.l.b16 %v526
        %v832 = vunpack.c.h.b16 %v526
        %v833 = vunpack.c.l.b16 %v527
        %v834 = vunpack.c.h.b16 %v527
        %v835 = vunpack.c.l.b16 %v528
        %v836 = vunpack.c.h.b16 %v528
        %v837 = vunpack.c.l.b16 %v529
        %v838 = vunpack.c.h.b16 %v529
        %v839 = vunpack.c.l.b16 %v530
        %v840 = vunpack.c.h.b16 %v530
        %v841 = vunpack.c.l.b16 %v531
        %v842 = vunpack.c.h.b16 %v531
        %v843 = vunpack.c.l.b16 %v532
        %v844 = vunpack.c.h.b16 %v532
        %v845 = vunpack.c.l.b16 %v533
        %v846 = vunpack.c.h.b16 %v533
        %v847 = vunpack.c.l.b16 %v534
        %v848 = vunpack.c.h.b16 %v534
        %v849 = vunpack.c.l.b16 %v535
        %v850 = vunpack.c.h.b16 %v535
        %v851 = vunpack.c.l.b16 %v536
        %v852 = vunpack.c.h.b16 %v536
        %v853 = vunpack.c.l.b16 %v537
        %v854 = vunpack.c.h.b16 %v537
        %v855 = vunpack.c.l.b16 %v538
        %v856 = vunpack.c.h.b16 %v538
        %v857 = vunpack.c.l.b16 %v539
        %v858 = vunpack.c.h.b16 %v539
        %v859 = vunpack.c.l.b16 %v540
        %v860 = vunpack.c.h.b16 %v540
        %v861 = vunpack.c.l.b16 %v541
        %v862 = vunpack.c.h.b16 %v541
        %v863 = vunpack.c.l.b16 %v542
        %v864 = vunpack.c.h.b16 %v542
        %v865 = vunpack.c.l.b16 %v543
        %v866 = vunpack.c.h.b16 %v543
        %v867 = vunpack.c.l.b16 %v544
        %v868 = vunpack.c.h.b16 %v544
        %v869 = vunpack.c.l.b16 %v545
        %v870 = vunpack.c.h.b16 %v545
        %v871 = vunpack.c.l.b16 %v546
        %v872 = vunpack.c.h.b16 %v546
        %v873 = vunpack.c.l.b16 %v547
        %v874 = vunpack.c.h.b16 %v547
        %v875 = vunpack.c.l.b16 %v548
        %v876 = vunpack.c.h.b16 %v548
        %v877 = vunpack.c.l.b16 %v549
        %v878 = vunpack.c.h.b16 %v549
        %v879 = vunpack.c.l.b16 %v550
        %v880 = vunpack.c.h.b16 %v550
        %v881 = vunpack.c.l.b16 %v551
        %v882 = vunpack.c.h.b16 %v551
        %v883 = vunpack.c.l.b16 %v552
        %v884 = vunpack.c.h.b16 %v552
        %v885 = vunpack.c.l.b16 %v553
        %v886 = vunpack.c.h.b16 %v553
        %v887 = vunpack.c.l.b16 %v554
        %v888 = vunpack.c.h.b16 %v554
        %v889 = vunpack.c.l.b16 %v555
        %v890 = vunpack.c.h.b16 %v555
        %v891 = vunpack.c.l.b16 %v556
        %v892 = vunpack.c.h.b16 %v556
        %v893 = vunpack.c.l.b16 %v557
        %v894 = vunpack.c.h.b16 %v557
        %v895 = vunpack.c.l.b16 %v558
        %v896 = vunpack.c.h.b16 %v558
        %v897 = vunpack.c.l.b16 %v559
        %v898 = vunpack.c.h.b16 %v559
        %v899 = vunpack.c.l.b16 %v560
        %v900 = vunpack.c.h.b16 %v560
        %v901 = vunpack.c.l.b16 %v561
        %v902 = vunpack.c.h.b16 %v561
        %v903 = vunpack.c.l.b16 %v562
        %v904 = vunpack.c.h.b16 %v562
        %v905 = vunpack.c.l.b16 %v563
        %v906 = vunpack.c.h.b16 %v563
        %v907 = vunpack.c.l.b16 %v564
        %v908 = vunpack.c.h.b16 %v564
        %v909 = vunpack.c.l.b16 %v565
        %v910 = vunpack.c.h.b16 %v565
        %v911 = vunpack.c.l.b16 %v566
        %v912 = vunpack.c.h.b16 %v566
        %v913 = vunpack.c.l.b16 %v567
        %v914 = vunpack.c.h.b16 %v567
        %v915 = vunpack.c.l.b16 %v568
        %v916 = vunpack.c.h.b16 %v568
        %v917 = vunpack.c.l.b16 %v569
        %v918 = vunpack.c.h.b16 %v569
        %v919 = vunpack.c.l.b16 %v570
        %v920 = vunpack.c.h.b16 %v570
        %v921 = vunpack.c.l.b16 %v571
        %v922 = vunpack.c.h.b16 %v571
        %v923 = vunpack.c.l.b16 %v572
        %v924 = vunpack.c.h.b16 %v572
        %v925 = vunpack.c.l.b16 %v573
        %v926 = vunpack.c.h.b16 %v573
        %v927 = vunpack.c.l.b16 %v574
        %v928 = vunpack.c.h.b16 %v574
        %v929 = vunpack.c.l.b16 %v575
        %v930 = vunpack.c.h.b16 %v575
        %v931 = vunpack.c.l.b16 %v576
        %v932 = vunpack.c.h.b16 %v576
        %v933 = vunpack.c.l.b16 %v577
        %v934 = vunpack.c.h.b16 %v577
        %v935 = vunpack.c.l.b16 %v578
        %v936 = vunpack.c.h.b16 %v578
        %v937 = vunpack.c.l.b16 %v579
        %v938 = vunpack.c.h.b16 %v579
        %v939 = vunpack.c.l.b16 %v580
        %v940 = vunpack.c.h.b16 %v580
        %v941 = vunpack.c.l.b16 %v581
        %v942 = vunpack.c.h.b16 %v581
        %v943 = vunpack.c.l.b16 %v582
        %v944 = vunpack.c.h.b16 %v582
        %v945 = vunpack.c.l.b16 %v583
        %v946 = vunpack.c.h.b16 %v583
        %v947 = vunpack.c.l.b16 %v584
        %v948 = vunpack.c.h.b16 %v584
        %v949 = vunpack.c.l.b16 %v585
        %v950 = vunpack.c.h.b16 %v585
        %v951 = vunpack.c.l.b16 %v586
        %v952 = vunpack.c.h.b16 %v586
        %v953 = vunpack.c.l.b16 %v587
        %v954 = vunpack.c.h.b16 %v587
        %v955 = vunpack.c.l.b16 %v588
        %v956 = vunpack.c.h.b16 %v588
        %v957 = vunpack.c.l.b16 %v589
        %v958 = vunpack.c.h.b16 %v589
        %v959 = vunpack.c.l.b16 %v590
        %v960 = vunpack.c.h.b16 %v590
        %v961 = vunpack.c.l.b16 %v591
        %v962 = vunpack.c.h.b16 %v591
        %v963 = vunpack.c.l.b16 %v592
        %v964 = vunpack.c.h.b16 %v592
        %v965 = vunpack.c.l.b16 %v593
        %v966 = vunpack.c.h.b16 %v593
        %v967 = vunpack.c.l.b16 %v594
        %v968 = vunpack.c.h.b16 %v594
        %v969 = vunpack.c.l.b16 %v595
        %v970 = vunpack.c.h.b16 %v595
        %v971 = vunpack.c.l.b16 %v596
        %v972 = vunpack.c.h.b16 %v596
        %v973 = vunpack.c.l.b16 %v597
        %v974 = vunpack.c.h.b16 %v597
        %v975 = vunpack.c.l.b16 %v598
        %v976 = vunpack.c.h.b16 %v598
        %v977 = vunpack.c.l.b16 %v599
        %v978 = vunpack.c.h.b16 %v599
        %v979 = vunpack.c.l.b16 %v600
        %v980 = vunpack.c.h.b16 %v600
        %v981 = vunpack.c.l.b16 %v601
        %v982 = vunpack.c.h.b16 %v601
        %v983 = vunpack.c.l.b16 %v602
        %v984 = vunpack.c.h.b16 %v602
        %v985 = vunpack.c.l.b16 %v603
        %v986 = vunpack.c.h.b16 %v603
        %v987 = vunpack.c.l.b16 %v604
        %v988 = vunpack.c.h.b16 %v604
        %v989 = vunpack.c.l.b16 %v605
        %v990 = vunpack.c.h.b16 %v605
        %v991 = vunpack.c.l.b16 %v606
        %v992 = vunpack.c.h.b16 %v606
        %v993 = vunpack.c.l.b16 %v607
        %v994 = vunpack.c.h.b16 %v607
        %v995 = vunpack.c.l.b16 %v608
        %v996 = vunpack.c.h.b16 %v608
        %v997 = vunpack.c.l.b16 %v609
        %v998 = vunpack.c.h.b16 %v609
        %v999 = vunpack.c.l.b16 %v610
        %v1000 = vunpack.c.h.b16 %v610
        %v1001 = vunpack.c.l.b16 %v611
        %v1002 = vunpack.c.h.b16 %v611
        %v1003 = vunpack.c.l.b16 %v612
        %v1004 = vunpack.c.h.b16 %v612
        %v1005 = vunpack.c.l.b16 %v613
        %v1006 = vunpack.c.h.b16 %v613
        %v1007 = vunpack.c.l.b16 %v614
        %v1008 = vunpack.c.h.b16 %v614
        %v1009 = vunpack.c.l.b16 %v615
        %v1010 = vunpack.c.h.b16 %v615
        %v1011 = vunpack.c.l.b16 %v616
        %v1012 = vunpack.c.h.b16 %v616
        %v1013 = vunpack.c.l.b16 %v617
        %v1014 = vunpack.c.h.b16 %v617
        %v1015 = vunpack.c.l.b16 %v618
        %v1016 = vunpack.c.h.b16 %v618
        %v1017 = vunpack.c.l.b16 %v619
        %v1018 = vunpack.c.h.b16 %v619
        %v1019 = vunpack.c.l.b16 %v620
        %v1020 = vunpack.c.h.b16 %v620
        %v1021 = vunpack.c.l.b16 %v621
        %v1022 = vunpack.c.h.b16 %v621
        %v1023 = vunpack.c.l.b16 %v622
        %v1024 = vunpack.c.h.b16 %v622
        %v1025 = vunpack.c.l.b16 %v623
        %v1026 = vunpack.c.h.b16 %v623
        %v1027 = vunpack.c.l.b16 %v624
        %v1028 = vunpack.c.h.b16 %v624
        %v1029 = vunpack.c.l.b16 %v625
        %v1030 = vunpack.c.h.b16 %v625
        %v1031 = vunpack.c.l.b16 %v626
        %v1032 = vunpack.c.h.b16 %v626
        %v1033 = vunpack.c.l.b16 %v627
        %v1034 = vunpack.c.h.b16 %v627
        %v1035 = vunpack.c.l.b16 %v628
        %v1036 = vunpack.c.h.b16 %v628
        %v1037 = vunpack.c.l.b16 %v629
        %v1038 = vunpack.c.h.b16 %v629
        %v1039 = vunpack.c.l.b16 %v630
        %v1040 = vunpack.c.h.b16 %v630
        %v1041 = vunpack.c.l.b16 %v631
        %v1042 = vunpack.c.h.b16 %v631
        %v1043 = vunpack.c.l.b16 %v632
        %v1044 = vunpack.c.h.b16 %v632
        %v1045 = vunpack.c.l.b16 %v633
        %v1046 = vunpack.c.h.b16 %v633
        %v1047 = vunpack.c.l.b16 %v634
        %v1048 = vunpack.c.h.b16 %v634
        %v1049 = vunpack.c.l.b16 %v635
        %v1050 = vunpack.c.h.b16 %v635
        %v1051 = vunpack.c.l.b16 %v636
        %v1052 = vunpack.c.h.b16 %v636
        %v1053 = vunpack.c.l.b16 %v637
        %v1054 = vunpack.c.h.b16 %v637
        %v1055 = vunpack.c.l.b16 %v638
        %v1056 = vunpack.c.h.b16 %v638
        %v1057 = vunpack.c.l.b16 %v639
        %v1058 = vunpack.c.h.b16 %v639
        %v1059 = vunpack.c.l.b16 %v640
        %v1060 = vunpack.c.h.b16 %v640
        %v1061 = vpack.c.b16 %v809, %v805
        %v1062 = vpack.c.b16 %v810, %v806
        %v1063 = vpack.c.b16 %v811, %v807
        %v1064 = vpack.c.b16 %v812, %v808
        %v1065 = vpack.c.b16 %v817, %v813
        %v1066 = vpack.c.b16 %v818, %v814
        %v1067 = vpack.c.b16 %v819, %v815
        %v1068 = vpack.c.b16 %v820, %v816
        %v1069 = vpack.c.b16 %v825, %v821
        %v1070 = vpack.c.b16 %v826, %v822
        %v1071 = vpack.c.b16 %v827, %v823
        %v1072 = vpack.c.b16 %v828, %v824
        %v1073 = vpack.c.b16 %v833, %v829
        %v1074 = vpack.c.b16 %v834, %v830
        %v1075 = vpack.c.b16 %v835, %v831
        %v1076 = vpack.c.b16 %v836, %v832
        %v1077 = vpack.c.b16 %v841, %v837
        %v1078 = vpack.c.b16 %v842, %v838
        %v1079 = vpack.c.b16 %v843, %v839
        %v1080 = vpack.c.b16 %v844, %v840
        %v1081 = vpack.c.b16 %v849, %v845
        %v1082 = vpack.c.b16 %v850, %v846
        %v1083 = vpack.c.b16 %v851, %v847
        %v1084 = vpack.c.b16 %v852, %v848
        %v1085 = vpack.c.b16 %v857, %v853
        %v1086 = vpack.c.b16 %v858, %v854
        %v1087 = vpack.c.b16 %v859, %v855
        %v1088 = vpack.c.b16 %v860, %v856
        %v1089 = vpack.c.b16 %v865, %v861
        %v1090 = vpack.c.b16 %v866, %v862
        %v1091 = vpack.c.b16 %v867, %v863
        %v1092 = vpack.c.b16 %v868, %v864
        %v1093 = vpack.c.b16 %v873, %v869
        %v1094 = vpack.c.b16 %v874, %v870
        %v1095 = vpack.c.b16 %v875, %v871
        %v1096 = vpack.c.b16 %v876, %v872
        %v1097 = vpack.c.b16 %v881, %v877
        %v1098 = vpack.c.b16 %v882, %v878
        %v1099 = vpack.c.b16 %v883, %v879
        %v1100 = vpack.c.b16 %v884, %v880
        %v1101 = vpack.c.b16 %v889, %v885
        %v1102 = vpack.c.b16 %v890, %v886
        %v1103 = vpack.c.b16 %v891, %v887
        %v1104 = vpack.c.b16 %v892, %v888
        %v1105 = vpack.c.b16 %v897, %v893
        %v1106 = vpack.c.b16 %v898, %v894
        %v1107 = vpack.c.b16 %v899, %v895
        %v1108 = vpack.c.b16 %v900, %v896
        %v1109 = vpack.c.b16 %v905, %v901
        %v1110 = vpack.c.b16 %v906, %v902
        %v1111 = vpack.c.b16 %v907, %v903
        %v1112 = vpack.c.b16 %v908, %v904
        %v1113 = vpack.c.b16 %v913, %v909
        %v1114 = vpack.c.b16 %v914, %v910
        %v1115 = vpack.c.b16 %v915, %v911
        %v1116 = vpack.c.b16 %v916, %v912
        %v1117 = vpack.c.b16 %v921, %v917
        %v1118 = vpack.c.b16 %v922, %v918
        %v1119 = vpack.c.b16 %v923, %v919
        %v1120 = vpack.c.b16 %v924, %v920
        %v1121 = vpack.c.b16 %v929, %v925
        %v1122 = vpack.c.b16 %v930, %v926
        %v1123 = vpack.c.b16 %v931, %v927
        %v1124 = vpack.c.b16 %v932, %v928
        %v1125 = vpack.c.b16 %v937, %v933
        %v1126 = vpack.c.b16 %v938, %v934
        %v1127 = vpack.c.b16 %v939, %v935
        %v1128 = vpack.c.b16 %v940, %v936
        %v1129 = vpack.c.b16 %v945, %v941
        %v1130 = vpack.c.b16 %v946, %v942
        %v1131 = vpack.c.b16 %v947, %v943
        %v1132 = vpack.c.b16 %v948, %v944
        %v1133 = vpack.c.b16 %v953, %v949
        %v1134 = vpack.c.b16 %v954, %v950
        %v1135 = vpack.c.b16 %v955, %v951
        %v1136 = vpack.c.b16 %v956, %v952
        %v1137 = vpack.c.b16 %v961, %v957
        %v1138 = vpack.c.b16 %v962, %v958
        %v1139 = vpack.c.b16 %v963, %v959
        %v1140 = vpack.c.b16 %v964, %v960
        %v1141 = vpack.c.b16 %v969, %v965
        %v1142 = vpack.c.b16 %v970, %v966
        %v1143 = vpack.c.b16 %v971, %v967
        %v1144 = vpack.c.b16 %v972, %v968
        %v1145 = vpack.c.b16 %v977, %v973
        %v1146 = vpack.c.b16 %v978, %v974
        %v1147 = vpack.c.b16 %v979, %v975
        %v1148 = vpack.c.b16 %v980, %v976
        %v1149 = vpack.c.b16 %v985, %v981
        %v1150 = vpack.c.b16 %v986, %v982
        %v1151 = vpack.c.b16 %v987, %v983
        %v1152 = vpack.c.b16 %v988, %v984
        %v1153 = vpack.c.b16 %v993, %v989
        %v1154 = vpack.c.b16 %v994, %v990
        %v1155 = vpack.c.b16 %v995, %v991
        %v1156 = vpack.c.b16 %v996, %v992
        %v1157 = vpack.c.b16 %v1001, %v997
        %v1158 = vpack.c.b16 %v1002, %v998
        %v1159 = vpack.c.b16 %v1003, %v999
        %v1160 = vpack.c.b16 %v1004, %v1000
        %v1161 = vpack.c.b16 %v1009, %v1005
        %v1162 = vpack.c.b16 %v1010, %v1006
        %v1163 = vpack.c.b16 %v1011, %v1007
        %v1164 = vpack.c.b16 %v1012, %v1008
        %v1165 = vpack.c.b16 %v1017, %v1013
        %v1166 = vpack.c.b16 %v1018, %v1014
        %v1167 = vpack.c.b16 %v1019, %v1015
        %v1168 = vpack.c.b16 %v1020, %v1016
        %v1169 = vpack.c.b16 %v1025, %v1021
        %v1170 = vpack.c.b16 %v1026, %v1022
        %v1171 = vpack.c.b16 %v1027, %v1023
        %v1172 = vpack.c.b16 %v1028, %v1024
        %v1173 = vpack.c.b16 %v1033, %v1029
        %v1174 = vpack.c.b16 %v1034, %v1030
        %v1175 = vpack.c.b16 %v1035, %v1031
        %v1176 = vpack.c.b16 %v1036, %v1032
        %v1177 = vpack.c.b16 %v1041, %v1037
        %v1178 = vpack.c.b16 %v1042, %v1038
        %v1179 = vpack.c.b16 %v1043, %v1039
        %v1180 = vpack.c.b16 %v1044, %v1040
        %v1181 = vpack.c.b16 %v1049, %v1045
        %v1182 = vpack.c.b16 %v1050, %v1046
        %v1183 = vpack.c.b16 %v1051, %v1047
        %v1184 = vpack.c.b16 %v1052, %v1048
        %v1185 = vpack.c.b16 %v1057, %v1053
        %v1186 = vpack.c.b16 %v1058, %v1054
        %v1187 = vpack.c.b16 %v1059, %v1055
        %v1188 = vpack.c.b16 %v1060, %v1056
        %1317 = vmatprep.subr.bf16.mxu0 %v1090
        %1318 = vmatpush1.bf16.msra.mxu0 %v1089
        %1319 = vmatprep.subr.bf16.mxu0 %v1086
        %1320 = vmatpush1.bf16.msra.mxu0 %v1085
        %1321 = vmatprep.subr.bf16.mxu0 %v1082
        %1322 = vmatpush1.bf16.msra.mxu0 %v1081
        %1323 = vmatprep.subr.bf16.mxu0 %v1078
        %1324 = vmatpush1.bf16.msra.mxu0 %v1077
        %1325 = vmatprep.subr.bf16.mxu0 %v1074
        %1326 = vmatpush1.bf16.msra.mxu0 %v1073
        %1327 = vmatprep.subr.bf16.mxu0 %v1070
        %1328 = vmatpush1.bf16.msra.mxu0 %v1069
        %1329 = vmatprep.subr.bf16.mxu0 %v1066
        %1330 = vmatpush1.bf16.msra.mxu0 %v1065
        %1331 = vmatprep.subr.bf16.mxu0 %v1062
        %1332 = vmatpush1.bf16.msra.mxu0 %v1061
        %1333 = vmatprep.subr.bf16.mxu0 %v1122
        %1334 = vmatpush2.bf16.msra.mxu0 %v1121
        %1335 = vmatprep.subr.bf16.mxu0 %v1118
        %1336 = vmatpush2.bf16.msra.mxu0 %v1117
        %1337 = vmatprep.subr.bf16.mxu0 %v1114
        %1338 = vmatpush2.bf16.msra.mxu0 %v1113
        %1339 = vmatprep.subr.bf16.mxu0 %v1110
        %1340 = vmatpush2.bf16.msra.mxu0 %v1109
        %1341 = vmatprep.subr.bf16.mxu0 %v1106
        %1342 = vmatpush2.bf16.msra.mxu0 %v1105
        %1343 = vmatprep.subr.bf16.mxu0 %v1102
        %1344 = vmatpush2.bf16.msra.mxu0 %v1101
        %1345 = vmatprep.subr.bf16.mxu0 %v1098
        %1346 = vmatpush2.bf16.msra.mxu0 %v1097
        %1347 = vmatprep.subr.bf16.mxu0 %v1094
        %1348 = vmatpush2.bf16.msra.mxu0 %v1093
        %1349 = vmatprep.mubr.bf16.mxu0 %v670
        %1350 = vmatmul.mubr.bf16.gmra.mxu0 %v669
        %v1351 = vpop.f32.mrf.mxu0
        %v1352 = vadd.f32 %v646, %v1351
        %v1353 = vpop.f32.mrf.mxu0
        %v1354 = vadd.f32 %v650, %v1353
        %v1355 = vpop.f32.mrf.mxu0
        %v1356 = vpop.f32.mrf.mxu0
        %1357 = vdwg.mxu0
        %1358 = vmatprep.subr.bf16.mxu0 %v1154
        %1359 = vmatpush1.bf16.msra.mxu0 %v1153
        %1360 = vmatprep.subr.bf16.mxu0 %v1150
        %1361 = vmatpush1.bf16.msra.mxu0 %v1149
        %1362 = vmatprep.subr.bf16.mxu0 %v1146
        %1363 = vmatpush1.bf16.msra.mxu0 %v1145
        %1364 = vmatprep.subr.bf16.mxu0 %v1142
        %1365 = vmatpush1.bf16.msra.mxu0 %v1141
        %1366 = vmatprep.subr.bf16.mxu0 %v1138
        %1367 = vmatpush1.bf16.msra.mxu0 %v1137
        %1368 = vmatprep.subr.bf16.mxu0 %v1134
        %1369 = vmatpush1.bf16.msra.mxu0 %v1133
        %1370 = vmatprep.subr.bf16.mxu0 %v1130
        %1371 = vmatpush1.bf16.msra.mxu0 %v1129
        %1372 = vmatprep.subr.bf16.mxu0 %v1126
        %1373 = vmatpush1.bf16.msra.mxu0 %v1125
        %1374 = vmatprep.subr.bf16.mxu0 %v1186
        %1375 = vmatpush2.bf16.msra.mxu0 %v1185
        %1376 = vmatprep.subr.bf16.mxu0 %v1182
        %1377 = vmatpush2.bf16.msra.mxu0 %v1181
        %1378 = vmatprep.subr.bf16.mxu0 %v1178
        %1379 = vmatpush2.bf16.msra.mxu0 %v1177
        %1380 = vmatprep.subr.bf16.mxu0 %v1174
        %1381 = vmatpush2.bf16.msra.mxu0 %v1173
        %1382 = vmatprep.subr.bf16.mxu0 %v1170
        %1383 = vmatpush2.bf16.msra.mxu0 %v1169
        %1384 = vmatprep.subr.bf16.mxu0 %v1166
        %1385 = vmatpush2.bf16.msra.mxu0 %v1165
        %1386 = vmatprep.subr.bf16.mxu0 %v1162
        %1387 = vmatpush2.bf16.msra.mxu0 %v1161
        %1388 = vmatprep.subr.bf16.mxu0 %v1158
        %1389 = vmatpush2.bf16.msra.mxu0 %v1157
        %1390 = vmatprep.mubr.bf16.mxu0 %v672
        %1391 = vmatmul.mubr.bf16.gmra.mxu0 %v671
        %v1392 = vpop.f32.mrf.mxu0
        %v1393 = vadd.f32 %v1352, %v1392
        %v1394 = vpop.f32.mrf.mxu0
        %v1395 = vadd.f32 %v1354, %v1394
        %v1396 = vpop.f32.mrf.mxu0
        %v1397 = vpop.f32.mrf.mxu0
        %1398 = vdwg.mxu0
        %1399 = vmatprep.subr.bf16.mxu0 %v1092
        %1400 = vmatpush1.bf16.msra.mxu0 %v1091
        %1401 = vmatprep.subr.bf16.mxu0 %v1088
        %1402 = vmatpush1.bf16.msra.mxu0 %v1087
        %1403 = vmatprep.subr.bf16.mxu0 %v1084
        %1404 = vmatpush1.bf16.msra.mxu0 %v1083
        %1405 = vmatprep.subr.bf16.mxu0 %v1080
        %1406 = vmatpush1.bf16.msra.mxu0 %v1079
        %1407 = vmatprep.subr.bf16.mxu0 %v1076
        %1408 = vmatpush1.bf16.msra.mxu0 %v1075
        %1409 = vmatprep.subr.bf16.mxu0 %v1072
        %1410 = vmatpush1.bf16.msra.mxu0 %v1071
        %1411 = vmatprep.subr.bf16.mxu0 %v1068
        %1412 = vmatpush1.bf16.msra.mxu0 %v1067
        %1413 = vmatprep.subr.bf16.mxu0 %v1064
        %1414 = vmatpush1.bf16.msra.mxu0 %v1063
        %1415 = vmatprep.subr.bf16.mxu0 %v1124
        %1416 = vmatpush2.bf16.msra.mxu0 %v1123
        %1417 = vmatprep.subr.bf16.mxu0 %v1120
        %1418 = vmatpush2.bf16.msra.mxu0 %v1119
        %1419 = vmatprep.subr.bf16.mxu0 %v1116
        %1420 = vmatpush2.bf16.msra.mxu0 %v1115
        %1421 = vmatprep.subr.bf16.mxu0 %v1112
        %1422 = vmatpush2.bf16.msra.mxu0 %v1111
        %1423 = vmatprep.subr.bf16.mxu0 %v1108
        %1424 = vmatpush2.bf16.msra.mxu0 %v1107
        %1425 = vmatprep.subr.bf16.mxu0 %v1104
        %1426 = vmatpush2.bf16.msra.mxu0 %v1103
        %1427 = vmatprep.subr.bf16.mxu0 %v1100
        %1428 = vmatpush2.bf16.msra.mxu0 %v1099
        %1429 = vmatprep.subr.bf16.mxu0 %v1096
        %1430 = vmatpush2.bf16.msra.mxu0 %v1095
        %1431 = vmatprep.mubr.bf16.mxu0 %v670
        %1432 = vmatmul.mubr.bf16.gmra.mxu0 %v669
        %v1433 = vpop.f32.mrf.mxu0
        %v1434 = vadd.f32 %v654, %v1433
        %v1435 = vpop.f32.mrf.mxu0
        %v1436 = vadd.f32 %v658, %v1435
        %v1437 = vpop.f32.mrf.mxu0
        %v1438 = vpop.f32.mrf.mxu0
        %1439 = vdwg.mxu0
        %1440 = vmatprep.subr.bf16.mxu0 %v1156
        %1441 = vmatpush1.bf16.msra.mxu0 %v1155
        %1442 = vmatprep.subr.bf16.mxu0 %v1152
        %1443 = vmatpush1.bf16.msra.mxu0 %v1151
        %1444 = vmatprep.subr.bf16.mxu0 %v1148
        %1445 = vmatpush1.bf16.msra.mxu0 %v1147
        %1446 = vmatprep.subr.bf16.mxu0 %v1144
        %1447 = vmatpush1.bf16.msra.mxu0 %v1143
        %1448 = vmatprep.subr.bf16.mxu0 %v1140
        %1449 = vmatpush1.bf16.msra.mxu0 %v1139
        %1450 = vmatprep.subr.bf16.mxu0 %v1136
        %1451 = vmatpush1.bf16.msra.mxu0 %v1135
        %1452 = vmatprep.subr.bf16.mxu0 %v1132
        %1453 = vmatpush1.bf16.msra.mxu0 %v1131
        %1454 = vmatprep.subr.bf16.mxu0 %v1128
        %1455 = vmatpush1.bf16.msra.mxu0 %v1127
        %1456 = vmatprep.subr.bf16.mxu0 %v1188
        %1457 = vmatpush2.bf16.msra.mxu0 %v1187
        %1458 = vmatprep.subr.bf16.mxu0 %v1184
        %1459 = vmatpush2.bf16.msra.mxu0 %v1183
        %1460 = vmatprep.subr.bf16.mxu0 %v1180
        %1461 = vmatpush2.bf16.msra.mxu0 %v1179
        %1462 = vmatprep.subr.bf16.mxu0 %v1176
        %1463 = vmatpush2.bf16.msra.mxu0 %v1175
        %1464 = vmatprep.subr.bf16.mxu0 %v1172
        %1465 = vmatpush2.bf16.msra.mxu0 %v1171
        %1466 = vmatprep.subr.bf16.mxu0 %v1168
        %1467 = vmatpush2.bf16.msra.mxu0 %v1167
        %1468 = vmatprep.subr.bf16.mxu0 %v1164
        %1469 = vmatpush2.bf16.msra.mxu0 %v1163
        %1470 = vmatprep.subr.bf16.mxu0 %v1160
        %1471 = vmatpush2.bf16.msra.mxu0 %v1159
        %1472 = vmatprep.mubr.bf16.mxu0 %v672
        %1473 = vmatmul.mubr.bf16.gmra.mxu0 %v671
        %v1474 = vpop.f32.mrf.mxu0
        %v1475 = vadd.f32 %v1434, %v1474
        %v1476 = vpop.f32.mrf.mxu0
        %v1477 = vadd.f32 %v1436, %v1476
        %v1478 = vpop.f32.mrf.mxu0
        %v1479 = vpop.f32.mrf.mxu0
        %1480 = vdwg.mxu0
        %v1481 = vrot.slane %v1393, 4
        %v1482 = vadd.f32 %v1393, %v1481
        %v1483 = vrot.slane %v1482, 2
        %v1484 = vadd.f32 %v1482, %v1483
        %v1485 = vrot.slane %v1484, 1
        %v1486 = vadd.f32 %v1484, %v1485
        %v1487 = vrot.slane %v1395, 4
        %v1488 = vadd.f32 %v1395, %v1487
        %v1489 = vrot.slane %v1488, 2
        %v1490 = vadd.f32 %v1488, %v1489
        %v1491 = vrot.slane %v1490, 1
        %v1492 = vadd.f32 %v1490, %v1491
        %v1493 = vrot.slane %v1475, 4
        %v1494 = vadd.f32 %v1475, %v1493
        %v1495 = vrot.slane %v1494, 2
        %v1496 = vadd.f32 %v1494, %v1495
        %v1497 = vrot.slane %v1496, 1
        %v1498 = vadd.f32 %v1496, %v1497
        %v1499 = vrot.slane %v1477, 4
        %v1500 = vadd.f32 %v1477, %v1499
        %v1501 = vrot.slane %v1500, 2
        %v1502 = vadd.f32 %v1500, %v1501
        %v1503 = vrot.slane %v1502, 1
        %v1504 = vadd.f32 %v1502, %v1503
        %v1505 = vrcp.pop 8.0
        %v1506 = vmul.f32 %v1486, %v1505
        %v1507 = vmul.f32 %v1492, %v1505
        %v1508 = vmul.f32 %v1498, %v1505
        %v1509 = vmul.f32 %v1504, %v1505
        %v1510 = vmul.f32 %v1393, %v1393
        %v1511 = vmul.f32 %v1395, %v1395
        %v1512 = vmul.f32 %v1475, %v1475
        %v1513 = vmul.f32 %v1477, %v1477
        %v1514 = vrot.slane %v1510, 4
        %v1515 = vadd.f32 %v1510, %v1514
        %v1516 = vrot.slane %v1515, 2
        %v1517 = vadd.f32 %v1515, %v1516
        %v1518 = vrot.slane %v1517, 1
        %v1519 = vadd.f32 %v1517, %v1518
        %v1520 = vrot.slane %v1511, 4
        %v1521 = vadd.f32 %v1511, %v1520
        %v1522 = vrot.slane %v1521, 2
        %v1523 = vadd.f32 %v1521, %v1522
        %v1524 = vrot.slane %v1523, 1
        %v1525 = vadd.f32 %v1523, %v1524
        %v1526 = vrot.slane %v1512, 4
        %v1527 = vadd.f32 %v1512, %v1526
        %v1528 = vrot.slane %v1527, 2
        %v1529 = vadd.f32 %v1527, %v1528
        %v1530 = vrot.slane %v1529, 1
        %v1531 = vadd.f32 %v1529, %v1530
        %v1532 = vrot.slane %v1513, 4
        %v1533 = vadd.f32 %v1513, %v1532
        %v1534 = vrot.slane %v1533, 2
        %v1535 = vadd.f32 %v1533, %v1534
        %v1536 = vrot.slane %v1535, 1
        %v1537 = vadd.f32 %v1535, %v1536
        %v1538 = vmul.f32 %v1519, %v1505
        %v1539 = vmul.f32 %v1525, %v1505
        %v1540 = vmul.f32 %v1531, %v1505
        %v1541 = vmul.f32 %v1537, %v1505
        %v1542 = vmul.f32 %v1506, %v1506
        %v1543 = vmul.f32 %v1507, %v1507
        %v1544 = vmul.f32 %v1508, %v1508
        %v1545 = vmul.f32 %v1509, %v1509
        %v1546 = vsub.f32 %v1538, %v1542
        %v1547 = vsub.f32 %v1539, %v1543
        %v1548 = vsub.f32 %v1540, %v1544
        %v1549 = vsub.f32 %v1541, %v1545
        %v1550 = vmax.f32 %v1546, 0.0
        %v1551 = vmax.f32 %v1547, 0.0
        %v1552 = vmax.f32 %v1548, 0.0
        %v1553 = vmax.f32 %v1549, 0.0
        %v1554 = vsub.f32 %v1393, %v1506
        %v1555 = vsub.f32 %v1395, %v1507
        %v1556 = vsub.f32 %v1475, %v1508
        %v1557 = vsub.f32 %v1477, %v1509
        %v1558 = vadd.f32 %v1550, 1e-05
        %v1559 = vadd.f32 %v1551, 1e-05
        %v1560 = vadd.f32 %v1552, 1e-05
        %v1561 = vadd.f32 %v1553, 1e-05
        %v1562 = vrsqrt.pop %v1558
        %v1563 = vrsqrt.pop %v1559
        %v1564 = vrsqrt.pop %v1560
        %v1565 = vrsqrt.pop %v1561
        %v1566 = vmul.f32 %v1554, %v1562
        %v1567 = vmul.f32 %v1555, %v1563
        %v1568 = vmul.f32 %v1556, %v1564
        %v1569 = vmul.f32 %v1557, %v1565
        %v1570 = vld [vmem:[%s432] sm:$0xf]
        %v1572 = vlaneseq
        %v1573 = vshrl.u32 %v1572, 7
        %v1574 = vsub.s32 0, %v1573
        %v1575 = vrot.slane %v1570, %v1574
        %v1576 = vlaneseq
        %v1577 = vshrl.u32 %v1576, 7
        %v1578 = vsub.s32 1, %v1577
        %v1579 = vrot.slane %v1570, %v1578
        %v1580 = vlaneseq
        %v1581 = vshrl.u32 %v1580, 7
        %v1582 = vsub.s32 2, %v1581
        %v1583 = vrot.slane %v1570, %v1582
        %v1584 = vlaneseq
        %v1585 = vshrl.u32 %v1584, 7
        %v1586 = vsub.s32 3, %v1585
        %v1587 = vrot.slane %v1570, %v1586
        %v1592 = vmul.f32 %v1566, %v1575
        %v1593 = vmul.f32 %v1567, %v1579
        %v1594 = vmul.f32 %v1568, %v1583
        %v1595 = vmul.f32 %v1569, %v1587
        %v1596 = vld [vmem:[%s441] sm:$0xf]
        %v1598 = vlaneseq
        %v1599 = vshrl.u32 %v1598, 7
        %v1600 = vsub.s32 0, %v1599
        %v1601 = vrot.slane %v1596, %v1600
        %v1602 = vlaneseq
        %v1603 = vshrl.u32 %v1602, 7
        %v1604 = vsub.s32 1, %v1603
        %v1605 = vrot.slane %v1596, %v1604
        %v1606 = vlaneseq
        %v1607 = vshrl.u32 %v1606, 7
        %v1608 = vsub.s32 2, %v1607
        %v1609 = vrot.slane %v1596, %v1608
        %v1610 = vlaneseq
        %v1611 = vshrl.u32 %v1610, 7
        %v1612 = vsub.s32 3, %v1611
        %v1613 = vrot.slane %v1596, %v1612
        %v1618 = vadd.f32 %v1592, %v1601
        %v1619 = vadd.f32 %v1593, %v1605
        %v1620 = vadd.f32 %v1594, %v1609
        %v1621 = vadd.f32 %v1595, %v1613
        %v1622 = vmul.f32 %v1618, 0.2
        %v1623 = vmul.f32 %v1619, 0.2
        %v1624 = vmul.f32 %v1620, 0.2
        %v1625 = vmul.f32 %v1621, 0.2
        %v1626 = vmax.f32 %v1618, %v1622
        %v1627 = vmax.f32 %v1619, %v1623
        %v1628 = vmax.f32 %v1620, %v1624
        %v1629 = vmax.f32 %v1621, %v1625
        %v1630 = vld [vmem:[#allocation13] sm:$0xff]
        %v1631 = vpack.c.bf16 %v1626, %v1626
        %v1632 = vpack.c.bf16 %v1627, %v1627
        %v1633 = vpack.c.bf16 %v1628, %v1628
        %v1634 = vpack.c.bf16 %v1629, %v1629
        %v1635 = vld [vmem:[%s450] sm:$0xf]
        %v1636 = vld [vmem:[%s450 + $0x4] sm:$0xf]
        %v1637 = vld [vmem:[%s450 + $0x8] sm:$0xf]
        %v1638 = vld [vmem:[%s450 + $0xc] sm:$0xf]
        %v1639 = vld [vmem:[%s450 + $0x10] sm:$0xf]
        %v1640 = vld [vmem:[%s450 + $0x14] sm:$0xf]
        %v1641 = vld [vmem:[%s450 + $0x18] sm:$0xf]
        %v1642 = vld [vmem:[%s450 + $0x1c] sm:$0xf]
        %v1643 = vld [vmem:[%s450 + $0x20] sm:$0xf]
        %v1644 = vld [vmem:[%s450 + $0x24] sm:$0xf]
        %v1645 = vld [vmem:[%s450 + $0x28] sm:$0xf]
        %v1646 = vld [vmem:[%s450 + $0x2c] sm:$0xf]
        %v1647 = vld [vmem:[%s450 + $0x30] sm:$0xf]
        %v1648 = vld [vmem:[%s450 + $0x34] sm:$0xf]
        %v1649 = vld [vmem:[%s450 + $0x38] sm:$0xf]
        %v1650 = vld [vmem:[%s450 + $0x3c] sm:$0xf]
        %v1651 = vld [vmem:[%s450 + $0x40] sm:$0xf]
        %v1652 = vld [vmem:[%s450 + $0x44] sm:$0xf]
        %v1653 = vld [vmem:[%s450 + $0x48] sm:$0xf]
        %v1654 = vld [vmem:[%s450 + $0x4c] sm:$0xf]
        %v1655 = vld [vmem:[%s450 + $0x50] sm:$0xf]
        %v1656 = vld [vmem:[%s450 + $0x54] sm:$0xf]
        %v1657 = vld [vmem:[%s450 + $0x58] sm:$0xf]
        %v1658 = vld [vmem:[%s450 + $0x5c] sm:$0xf]
        %v1659 = vld [vmem:[%s450 + $0x60] sm:$0xf]
        %v1660 = vld [vmem:[%s450 + $0x64] sm:$0xf]
        %v1661 = vld [vmem:[%s450 + $0x68] sm:$0xf]
        %v1662 = vld [vmem:[%s450 + $0x6c] sm:$0xf]
        %v1663 = vld [vmem:[%s450 + $0x70] sm:$0xf]
        %v1664 = vld [vmem:[%s450 + $0x74] sm:$0xf]
        %v1665 = vld [vmem:[%s450 + $0x78] sm:$0xf]
        %v1666 = vld [vmem:[%s450 + $0x7c] sm:$0xf]
        %v1667 = vld [vmem:[%s450 + $0x80] sm:$0xf]
        %v1668 = vld [vmem:[%s450 + $0x84] sm:$0xf]
        %v1669 = vld [vmem:[%s450 + $0x88] sm:$0xf]
        %v1670 = vld [vmem:[%s450 + $0x8c] sm:$0xf]
        %v1671 = vld [vmem:[%s450 + $0x90] sm:$0xf]
        %v1672 = vld [vmem:[%s450 + $0x94] sm:$0xf]
        %v1673 = vld [vmem:[%s450 + $0x98] sm:$0xf]
        %v1674 = vld [vmem:[%s450 + $0x9c] sm:$0xf]
        %v1675 = vld [vmem:[%s450 + $0xa0] sm:$0xf]
        %v1676 = vld [vmem:[%s450 + $0xa4] sm:$0xf]
        %v1677 = vld [vmem:[%s450 + $0xa8] sm:$0xf]
        %v1678 = vld [vmem:[%s450 + $0xac] sm:$0xf]
        %v1679 = vld [vmem:[%s450 + $0xb0] sm:$0xf]
        %v1680 = vld [vmem:[%s450 + $0xb4] sm:$0xf]
        %v1681 = vld [vmem:[%s450 + $0xb8] sm:$0xf]
        %v1682 = vld [vmem:[%s450 + $0xbc] sm:$0xf]
        %v1683 = vld [vmem:[%s450 + $0xc0] sm:$0xf]
        %v1684 = vld [vmem:[%s450 + $0xc4] sm:$0xf]
        %v1685 = vld [vmem:[%s450 + $0xc8] sm:$0xf]
        %v1686 = vld [vmem:[%s450 + $0xcc] sm:$0xf]
        %v1687 = vld [vmem:[%s450 + $0xd0] sm:$0xf]
        %v1688 = vld [vmem:[%s450 + $0xd4] sm:$0xf]
        %v1689 = vld [vmem:[%s450 + $0xd8] sm:$0xf]
        %v1690 = vld [vmem:[%s450 + $0xdc] sm:$0xf]
        %v1691 = vld [vmem:[%s450 + $0xe0] sm:$0xf]
        %v1692 = vld [vmem:[%s450 + $0xe4] sm:$0xf]
        %v1693 = vld [vmem:[%s450 + $0xe8] sm:$0xf]
        %v1694 = vld [vmem:[%s450 + $0xec] sm:$0xf]
        %v1695 = vld [vmem:[%s450 + $0xf0] sm:$0xf]
        %v1696 = vld [vmem:[%s450 + $0xf4] sm:$0xf]
        %v1697 = vld [vmem:[%s450 + $0xf8] sm:$0xf]
        %v1698 = vld [vmem:[%s450 + $0xfc] sm:$0xf]
        %v1763 = vunpack.c.l.b16 %v1635
        %v1764 = vunpack.c.l.b16 %v1636
        %v1765 = vunpack.c.l.b16 %v1637
        %v1766 = vunpack.c.l.b16 %v1638
        %v1767 = vunpack.c.l.b16 %v1639
        %v1768 = vunpack.c.l.b16 %v1640
        %v1769 = vunpack.c.l.b16 %v1641
        %v1770 = vunpack.c.l.b16 %v1642
        %v1771 = vunpack.c.l.b16 %v1643
        %v1772 = vunpack.c.l.b16 %v1644
        %v1773 = vunpack.c.l.b16 %v1645
        %v1774 = vunpack.c.l.b16 %v1646
        %v1775 = vunpack.c.l.b16 %v1647
        %v1776 = vunpack.c.l.b16 %v1648
        %v1777 = vunpack.c.l.b16 %v1649
        %v1778 = vunpack.c.l.b16 %v1650
        %v1779 = vunpack.c.l.b16 %v1651
        %v1780 = vunpack.c.l.b16 %v1652
        %v1781 = vunpack.c.l.b16 %v1653
        %v1782 = vunpack.c.l.b16 %v1654
        %v1783 = vunpack.c.l.b16 %v1655
        %v1784 = vunpack.c.l.b16 %v1656
        %v1785 = vunpack.c.l.b16 %v1657
        %v1786 = vunpack.c.l.b16 %v1658
        %v1787 = vunpack.c.l.b16 %v1659
        %v1788 = vunpack.c.l.b16 %v1660
        %v1789 = vunpack.c.l.b16 %v1661
        %v1790 = vunpack.c.l.b16 %v1662
        %v1791 = vunpack.c.l.b16 %v1663
        %v1792 = vunpack.c.l.b16 %v1664
        %v1793 = vunpack.c.l.b16 %v1665
        %v1794 = vunpack.c.l.b16 %v1666
        %v1795 = vunpack.c.l.b16 %v1667
        %v1796 = vunpack.c.l.b16 %v1668
        %v1797 = vunpack.c.l.b16 %v1669
        %v1798 = vunpack.c.l.b16 %v1670
        %v1799 = vunpack.c.l.b16 %v1671
        %v1800 = vunpack.c.l.b16 %v1672
        %v1801 = vunpack.c.l.b16 %v1673
        %v1802 = vunpack.c.l.b16 %v1674
        %v1803 = vunpack.c.l.b16 %v1675
        %v1804 = vunpack.c.l.b16 %v1676
        %v1805 = vunpack.c.l.b16 %v1677
        %v1806 = vunpack.c.l.b16 %v1678
        %v1807 = vunpack.c.l.b16 %v1679
        %v1808 = vunpack.c.l.b16 %v1680
        %v1809 = vunpack.c.l.b16 %v1681
        %v1810 = vunpack.c.l.b16 %v1682
        %v1811 = vunpack.c.l.b16 %v1683
        %v1812 = vunpack.c.l.b16 %v1684
        %v1813 = vunpack.c.l.b16 %v1685
        %v1814 = vunpack.c.l.b16 %v1686
        %v1815 = vunpack.c.l.b16 %v1687
        %v1816 = vunpack.c.l.b16 %v1688
        %v1817 = vunpack.c.l.b16 %v1689
        %v1818 = vunpack.c.l.b16 %v1690
        %v1819 = vunpack.c.l.b16 %v1691
        %v1820 = vunpack.c.l.b16 %v1692
        %v1821 = vunpack.c.l.b16 %v1693
        %v1822 = vunpack.c.l.b16 %v1694
        %v1823 = vunpack.c.l.b16 %v1695
        %v1824 = vunpack.c.l.b16 %v1696
        %v1825 = vunpack.c.l.b16 %v1697
        %v1826 = vunpack.c.l.b16 %v1698
        %v1827 = vpack.c.b16 %v1764, %v1763
        %v1828 = vpack.c.b16 %v1766, %v1765
        %v1829 = vpack.c.b16 %v1768, %v1767
        %v1830 = vpack.c.b16 %v1770, %v1769
        %v1831 = vpack.c.b16 %v1772, %v1771
        %v1832 = vpack.c.b16 %v1774, %v1773
        %v1833 = vpack.c.b16 %v1776, %v1775
        %v1834 = vpack.c.b16 %v1778, %v1777
        %v1835 = vpack.c.b16 %v1780, %v1779
        %v1836 = vpack.c.b16 %v1782, %v1781
        %v1837 = vpack.c.b16 %v1784, %v1783
        %v1838 = vpack.c.b16 %v1786, %v1785
        %v1839 = vpack.c.b16 %v1788, %v1787
        %v1840 = vpack.c.b16 %v1790, %v1789
        %v1841 = vpack.c.b16 %v1792, %v1791
        %v1842 = vpack.c.b16 %v1794, %v1793
        %v1843 = vpack.c.b16 %v1796, %v1795
        %v1844 = vpack.c.b16 %v1798, %v1797
        %v1845 = vpack.c.b16 %v1800, %v1799
        %v1846 = vpack.c.b16 %v1802, %v1801
        %v1847 = vpack.c.b16 %v1804, %v1803
        %v1848 = vpack.c.b16 %v1806, %v1805
        %v1849 = vpack.c.b16 %v1808, %v1807
        %v1850 = vpack.c.b16 %v1810, %v1809
        %v1851 = vpack.c.b16 %v1812, %v1811
        %v1852 = vpack.c.b16 %v1814, %v1813
        %v1853 = vpack.c.b16 %v1816, %v1815
        %v1854 = vpack.c.b16 %v1818, %v1817
        %v1855 = vpack.c.b16 %v1820, %v1819
        %v1856 = vpack.c.b16 %v1822, %v1821
        %v1857 = vpack.c.b16 %v1824, %v1823
        %v1858 = vpack.c.b16 %v1826, %v1825
        %1891 = vmatprep.subr.bf16.mxu0 0
        %1892 = vmatpush1.bf16.msra.mxu0 %v1834
        %1893 = vmatprep.subr.bf16.mxu0 0
        %1894 = vmatpush1.bf16.msra.mxu0 %v1833
        %1895 = vmatprep.subr.bf16.mxu0 0
        %1896 = vmatpush1.bf16.msra.mxu0 %v1832
        %1897 = vmatprep.subr.bf16.mxu0 0
        %1898 = vmatpush1.bf16.msra.mxu0 %v1831
        %1899 = vmatprep.subr.bf16.mxu0 0
        %1900 = vmatpush1.bf16.msra.mxu0 %v1830
        %1901 = vmatprep.subr.bf16.mxu0 0
        %1902 = vmatpush1.bf16.msra.mxu0 %v1829
        %1903 = vmatprep.subr.bf16.mxu0 0
        %1904 = vmatpush1.bf16.msra.mxu0 %v1828
        %1905 = vmatprep.subr.bf16.mxu0 0
        %1906 = vmatpush1.bf16.msra.mxu0 %v1827
        %1907 = vmatprep.subr.bf16.mxu0 0
        %1908 = vmatpush2.bf16.msra.mxu0 %v1842
        %1909 = vmatprep.subr.bf16.mxu0 0
        %1910 = vmatpush2.bf16.msra.mxu0 %v1841
        %1911 = vmatprep.subr.bf16.mxu0 0
        %1912 = vmatpush2.bf16.msra.mxu0 %v1840
        %1913 = vmatprep.subr.bf16.mxu0 0
        %1914 = vmatpush2.bf16.msra.mxu0 %v1839
        %1915 = vmatprep.subr.bf16.mxu0 0
        %1916 = vmatpush2.bf16.msra.mxu0 %v1838
        %1917 = vmatprep.subr.bf16.mxu0 0
        %1918 = vmatpush2.bf16.msra.mxu0 %v1837
        %1919 = vmatprep.subr.bf16.mxu0 0
        %1920 = vmatpush2.bf16.msra.mxu0 %v1836
        %1921 = vmatprep.subr.bf16.mxu0 0
        %1922 = vmatpush2.bf16.msra.mxu0 %v1835
        %1923 = vmatprep.mubr.bf16.mxu0 %v1632
        %1924 = vmatmul.mubr.bf16.gmra.mxu0 %v1631
        %v1925 = vpop.f32.mrf.mxu0
        %v1926 = vadd.f32 0.0, %v1925
        %v1927 = vpop.f32.mrf.mxu0
        %v1928 = vpop.f32.mrf.mxu0
        %v1929 = vpop.f32.mrf.mxu0
        %1930 = vdwg.mxu0
        %1931 = vmatprep.subr.bf16.mxu0 0
        %1932 = vmatpush1.bf16.msra.mxu0 %v1850
        %1933 = vmatprep.subr.bf16.mxu0 0
        %1934 = vmatpush1.bf16.msra.mxu0 %v1849
        %1935 = vmatprep.subr.bf16.mxu0 0
        %1936 = vmatpush1.bf16.msra.mxu0 %v1848
        %1937 = vmatprep.subr.bf16.mxu0 0
        %1938 = vmatpush1.bf16.msra.mxu0 %v1847
        %1939 = vmatprep.subr.bf16.mxu0 0
        %1940 = vmatpush1.bf16.msra.mxu0 %v1846
        %1941 = vmatprep.subr.bf16.mxu0 0
        %1942 = vmatpush1.bf16.msra.mxu0 %v1845
        %1943 = vmatprep.subr.bf16.mxu0 0
        %1944 = vmatpush1.bf16.msra.mxu0 %v1844
        %1945 = vmatprep.subr.bf16.mxu0 0
        %1946 = vmatpush1.bf16.msra.mxu0 %v1843
        %1947 = vmatprep.subr.bf16.mxu0 0
        %1948 = vmatpush2.bf16.msra.mxu0 %v1858
        %1949 = vmatprep.subr.bf16.mxu0 0
        %1950 = vmatpush2.bf16.msra.mxu0 %v1857
        %1951 = vmatprep.subr.bf16.mxu0 0
        %1952 = vmatpush2.bf16.msra.mxu0 %v1856
        %1953 = vmatprep.subr.bf16.mxu0 0
        %1954 = vmatpush2.bf16.msra.mxu0 %v1855
        %1955 = vmatprep.subr.bf16.mxu0 0
        %1956 = vmatpush2.bf16.msra.mxu0 %v1854
        %1957 = vmatprep.subr.bf16.mxu0 0
        %1958 = vmatpush2.bf16.msra.mxu0 %v1853
        %1959 = vmatprep.subr.bf16.mxu0 0
        %1960 = vmatpush2.bf16.msra.mxu0 %v1852
        %1961 = vmatprep.subr.bf16.mxu0 0
        %1962 = vmatpush2.bf16.msra.mxu0 %v1851
        %1963 = vmatprep.mubr.bf16.mxu0 %v1634
        %1964 = vmatmul.mubr.bf16.gmra.mxu0 %v1633
        %v1965 = vpop.f32.mrf.mxu0
        %v1966 = vadd.f32 %v1926, %v1965
        %v1967 = vpop.f32.mrf.mxu0
        %v1968 = vpop.f32.mrf.mxu0
        %v1969 = vpop.f32.mrf.mxu0
        %1970 = vdwg.mxu0
        %v1971 = vadd.f32 %v1630, %v1966
        %1972 = vst [vmem:[#allocation13] sm:$0xff] %v1971
        %p1973 = scmp.eq.s32.totalorder %s31, 1
        // Predicated region
        $region85: #{tpu_custom_call.1} parent=55 // pred_check
          %p1974 = pneg %p1973
        $region86: #{tpu_custom_call.1} parent=55 // pred_check_branch
          %1976 = sbr.rel (%p1974) target = $region88
        $region87: #{tpu_custom_call.1} parent=55 // pred_region
          %v1977 = vld [vmem:[#allocation13] sm:$0xff]
          %v1978 = vld [vmem:[%s6] sm:$0x1]
          %v1980 = vlaneseq
          %v1981 = vshrl.u32 %v1980, 7
          %v1982 = vsub.s32 0, %v1981
          %v1983 = vrot.slane %v1978, %v1982
          %v1985 = vadd.f32 %v1977, %v1983
          %v1986 = vrot.slane %v1985, 4
          %v1987 = vadd.f32 %v1985, %v1986
          %v1988 = vrot.slane %v1987, 2
          %v1989 = vadd.f32 %v1987, %v1988
          %v1990 = vrot.slane %v1989, 1
          %v1991 = vadd.f32 %v1989, %v1990
          %v1992 = vmul.f32 %v1991, %v1505
          %v1993 = vmul.f32 %v1985, %v1985
          %v1994 = vrot.slane %v1993, 4
          %v1995 = vadd.f32 %v1993, %v1994
          %v1996 = vrot.slane %v1995, 2
          %v1997 = vadd.f32 %v1995, %v1996
          %v1998 = vrot.slane %v1997, 1
          %v1999 = vadd.f32 %v1997, %v1998
          %v2000 = vmul.f32 %v1999, %v1505
          %v2001 = vmul.f32 %v1992, %v1992
          %v2002 = vsub.f32 %v2000, %v2001
          %v2003 = vmax.f32 %v2002, 0.0
          %v2004 = vsub.f32 %v1985, %v1992
          %v2005 = vadd.f32 %v2003, 1e-05
          %v2006 = vrsqrt.pop %v2005
          %v2007 = vmul.f32 %v2004, %v2006
          %v2008 = vld [vmem:[%s7] sm:$0x1]
          %v2010 = vlaneseq
          %v2011 = vshrl.u32 %v2010, 7
          %v2012 = vsub.s32 0, %v2011
          %v2013 = vrot.slane %v2008, %v2012
          %v2015 = vmul.f32 %v2007, %v2013
          %v2016 = vld [vmem:[%s8] sm:$0x1]
          %v2018 = vlaneseq
          %v2019 = vshrl.u32 %v2018, 7
          %v2020 = vsub.s32 0, %v2019
          %v2021 = vrot.slane %v2016, %v2020
          %v2023 = vadd.f32 %v2015, %v2021
          %v2024 = vmul.f32 %v2023, 0.5
          %v2025 = vtanh.pop %v2024
          %v2026 = vadd.f32 %v2025, 1.0
          %v2027 = vmul.f32 %v2026, 0.5
          %2028 = vst [vmem:[#allocation13] sm:$0xff] %v2027
        $region88: #{tpu_custom_call.1} parent=55 // pred_fallthru
          _
        // Predicated region
        $region89: #{tpu_custom_call.1} parent=55 // pred_check
          %p2029 = pneg %p258
        $region90: #{tpu_custom_call.1} parent=55 // pred_check_branch
          %2031 = sbr.rel (%p2029) target = $region92
        $region91: #{tpu_custom_call.1} parent=55 // pred_region
          %s2033 = ssub.s32 128, 128
          %2034 = vsyncadd [#allocation4], %s2033
          %s2036 = sshll.u32 [#allocation13], 4
          %s2037 = int_to_ptr.vmem [resolvable:$true] %s2036
          %2039 = dma.vmem_to_hbm [thread:$0]  %s2037, 128, %s9, [#allocation4]
        $region92: #{tpu_custom_call.1} parent=55 // pred_fallthru
          _
        // Predicated region
        $region93: #{tpu_custom_call.1} parent=55 // pred_check
          %p2040 = pneg %p258
        $region94: #{tpu_custom_call.1} parent=55 // pred_check_branch
          %2042 = sbr.rel (%p2040) target = $region96
        $region95: #{tpu_custom_call.1} parent=55 // pred_region
          %2043 = dma.done [#allocation4], 128
        $region96: #{tpu_custom_call.1} parent=55 // pred_fallthru
          _
      $region56: #{tpu_custom_call.1} parent=5 // pred_fallthru
        _
      %p2044 = scmp.le.s32.totalorder 2, %s26
      // Predicated region
      $region97: #{tpu_custom_call.1} parent=5 // pred_check
        %p2045 = pneg %p2044
      $region98: #{tpu_custom_call.1} parent=5 // pred_check_branch
        %2047 = sbr.rel (%p2045) target = $region100
      $region99: #{tpu_custom_call.1} parent=5 // pred_region
        %s2048 = ssub.s32 %s26, 2
      $region100: #{tpu_custom_call.1} parent=5 // pred_fallthru
        _
    $region6: #{tpu_custom_call.1} parent=1 // loop_footer
      %s30 = sadd.s32 1, %s26
    $region7: #{tpu_custom_call.1} parent=1 // loop_footer_branch
      %25 = sbr.rel target = $region3
    $region8: #{tpu_custom_call.1} parent=1 // loop_exit
      _
    %2049 = vsyncpa [#allocation3], 1
    %s2050 = scalar_lea.sflag [#allocation3], 1
    %2051 = vsyncpa %s2050, 1
    %2052 = vsyncpa [#allocation6], 1
    %s2053 = scalar_lea.sflag [#allocation6], 1
    %2054 = vsyncpa %s2053, 1
    %2055 = vsyncpa [#allocation9], 1
    %s2056 = scalar_lea.sflag [#allocation9], 1
    %2057 = vsyncpa %s2056, 1
    %2058 = vsyncpa [#allocation12], 1
    %s2059 = scalar_lea.sflag [#allocation12], 1
    %2060 = vsyncpa %s2059, 1
    %2061 = vsyncpa [#allocation4], 1
    %s2062 = scalar_lea.sflag [#allocation4], 1
    %2063 = vsyncpa %s2062, 1

</llo_original>
